<compile_context>
chip_gen: v5e
topology: v5e:2x2
jax: 0.10.0
libtpu: 0.0.40
codegen_flags: <defaults>
</compile_context>

<pallas_src>
import math

import jax
import jax.numpy as jnp
from jax import lax
from jax.experimental import pallas as pl
from jax.experimental.pallas import tpu as pltpu

# ---- sizes (small, consistent with the module) ----
B = 2      # batch
S = 8      # sequence length
H = 32     # hidden_size
NH = 4     # num_attention_heads
HD = H // NH   # attention_head_size
I = 64     # intermediate_size
EPS = 1e-5
NEG_BIG = -1e30   # finite "-inf" sentinel for key-padding masking

# packed parameter slab layout (f32, (SLAB_R, SLAB_C)); column starts 128-aligned
SLAB_R, SLAB_C = 64, 512
WQKV_C, WO_C, WI_C, WO2_C = 0, 128, 256, 384
VEC_R = 32                      # bias / LayerNorm vectors live at rows 32..39


def _layer_norm(x, gamma, beta):
    mu = jnp.mean(x, axis=-1, keepdims=True)
    var = jnp.mean((x - mu) ** 2, axis=-1, keepdims=True)
    return (x - mu) * lax.rsqrt(var + EPS) * gamma + beta


def _gelu_exact(x):
    # matches torch.nn.functional.gelu (exact erf form)
    return 0.5 * x * (1.0 + lax.erf(x / math.sqrt(2.0)))


def bert_layer_kernel(h_ref, mask_ref, w_ref, out_ref):
    h = h_ref[...]                                  # (B*S, H) f32

    # ---- static slices of the packed parameter slab ----
    wqkv = w_ref[0:H, WQKV_C:WQKV_C + 3 * H]        # (H, 3H); Q cols pre-scaled
    wo   = w_ref[0:H, WO_C:WO_C + H]                # (H, H)   self-output dense
    wo2  = w_ref[0:I, WO2_C:WO2_C + H]              # (I, H)   output dense
    wi   = w_ref[0:H, WI_C:WI_C + I]                # (H, I)   intermediate dense
    vec  = w_ref[VEC_R:VEC_R + 8, 0:128]            # (8, 128) packed small vectors

    bqkv = vec[0:1, 0:3 * H]   # [bq*scale | 0 (key linear has no bias) | bv]
    bi   = vec[1:2, 0:I]
    bo   = vec[2:3, 0:H]
    g1   = vec[3:4, 0:H]
    be1  = vec[4:5, 0:H]
    bo2  = vec[5:6, 0:H]
    g2   = vec[6:7, 0:H]
    be2  = vec[7:8, 0:H]

    # ---- fused QKV projection: one MXU matmul instead of three ----
    qkv = jnp.dot(h, wqkv, preferred_element_type=jnp.float32) + bqkv   # (B*S, 3H)

    def to_heads(x2d):   # (B*S, H) -> (B*NH, S, HD); done once per tensor
        return x2d.reshape(B, S, NH, HD).transpose(0, 2, 1, 3).reshape(B * NH, S, HD)

    q = to_heads(qkv[:, 0:H])              # 1/sqrt(HD) already folded into weights
    k = to_heads(qkv[:, H:2 * H])
    v = to_heads(qkv[:, 2 * H:3 * H])

    # ---- additive mask bias built in-kernel, broadcast exactly once ----
    bias = mask_ref[...] * NEG_BIG                                   # (B, S)
    bias = jnp.broadcast_to(bias[:, None, None, :],
                            (B, NH, 1, S)).reshape(B * NH, 1, S)

    # ---- head-batched attention (single batch dim B*NH) ----
    s = jnp.einsum('bqd,bkd->bqk', q, k,
                   preferred_element_type=jnp.float32)               # (B*NH, S, S)
    s = s + bias
    m = jnp.max(s, axis=-1, keepdims=True)
    e = jnp.exp(s - m)
    denom = jnp.sum(e, axis=-1, keepdims=True)
    r = pl.reciprocal(denom, approx=True)
    r = r * (2.0 - denom * r)          # one Newton step -> full f32 accuracy
    p = e * r
    ctx = jnp.einsum('bqk,bkd->bqd', p, v,
                     preferred_element_type=jnp.float32)             # (B*NH, S, HD)

    # re-assemble heads along the lane axis, then ONE K=H output projection
    ctx = ctx.reshape(B, NH, S, HD).transpose(0, 2, 1, 3).reshape(B * S, H)
    attn = jnp.dot(ctx, wo, preferred_element_type=jnp.float32) + bo

    # ---- BertSelfOutput: dense (above) + residual + LayerNorm ----
    attn_out = _layer_norm(attn + h, g1, be1)

    # ---- BertIntermediate: dense + exact-erf gelu ----
    inter = _gelu_exact(
        jnp.dot(attn_out, wi, preferred_element_type=jnp.float32) + bi)

    # ---- BertOutput: dense + residual + LayerNorm ----
    out = jnp.dot(inter, wo2, preferred_element_type=jnp.float32) + bo2
    out_ref[...] = _layer_norm(out + attn_out, g2, be2)


def prepare_params(params):
    """One-time param fusion + packing into a single slab (outside the hot path)."""
    assert 3 * H <= 128 and H <= 128 and I <= 128, "slab column layout overflow"
    assert H <= VEC_R and I <= SLAB_R and VEC_R + 8 <= SLAB_R, "slab row overflow"
    scale = 1.0 / math.sqrt(HD)
    wqkv = jnp.concatenate(
        [params["wq_t"] * scale, params["wk_t"], params["wv_t"]], axis=1)   # (H, 3H)
    bqkv = jnp.concatenate(
        [params["bq"] * scale, jnp.zeros((1, H), jnp.float32), params["bv"]], axis=1)

    slab = jnp.zeros((SLAB_R, SLAB_C), jnp.float32)
    slab = slab.at[0:H, WQKV_C:WQKV_C + 3 * H].set(wqkv)
    slab = slab.at[0:H, WO_C:WO_C + H].set(params["wo_t"])
    slab = slab.at[0:H, WI_C:WI_C + I].set(params["wi_t"])
    slab = slab.at[0:I, WO2_C:WO2_C + H].set(params["wo2_t"])
    slab = slab.at[VEC_R + 0, 0:3 * H].set(bqkv[0])
    slab = slab.at[VEC_R + 1, 0:I].set(params["bi"][0])
    slab = slab.at[VEC_R + 2, 0:H].set(params["bo"][0])
    slab = slab.at[VEC_R + 3, 0:H].set(params["g1"][0])
    slab = slab.at[VEC_R + 4, 0:H].set(params["be1"][0])
    slab = slab.at[VEC_R + 5, 0:H].set(params["bo2"][0])
    slab = slab.at[VEC_R + 6, 0:H].set(params["g2"][0])
    slab = slab.at[VEC_R + 7, 0:H].set(params["be2"][0])
    return slab


# advisory cost estimate (scheduler hint only)
_FLOPS = (2 * B * S * H * 3 * H            # fused QKV projection
          + 2 * (B * NH) * S * S * HD * 2  # scores + context
          + 2 * B * S * H * H              # attention output projection
          + 2 * B * S * H * I              # intermediate dense
          + 2 * B * S * I * H)             # output dense
_TRANS = B * NH * S * S + B * S * I + B * NH * S + 2 * B * S
_BYTES = 4 * (B * S * H + B * S + SLAB_R * SLAB_C + B * S * H)


@jax.jit
def bert_layer(hidden_states, key_pad_mask, wslab):
    """hidden_states: (B, S, H) f32.
    key_pad_mask: (B, S) f32 with 1.0 = masked key, 0.0 = attend.
    wslab: packed parameter slab from prepare_params()."""
    Bv, Sv, Hv = hidden_states.shape
    h2d = hidden_states.reshape(Bv * Sv, Hv)                 # free view reshape
    out2d = pl.pallas_call(
        bert_layer_kernel,
        out_shape=jax.ShapeDtypeStruct((Bv * Sv, Hv), jnp.float32),
        # single invocation, everything VMEM-resident (no grid)
        in_specs=[pl.BlockSpec(memory_space=pltpu.MemorySpace.VMEM)] * 3,
        out_specs=pl.BlockSpec(memory_space=pltpu.MemorySpace.VMEM),
        cost_estimate=pl.CostEstimate(flops=_FLOPS, transcendentals=_TRANS,
                                      bytes_accessed=_BYTES),
    )(h2d, key_pad_mask, wslab)
    return out2d.reshape(Bv, Sv, Hv)


def reference(hidden_states, attention_mask, p):
    """Pure-JAX reference of the same forward (torch semantics), for validation."""
    h = hidden_states
    q = h @ p["wq_t"] + p["bq"]
    k = h @ p["wk_t"]                       # key linear has no bias in this config
    v = h @ p["wv_t"] + p["bv"]

    def split(x):  # (B,S,H) -> (B,NH,S,HD)
        return x.reshape(B, S, NH, HD).transpose(0, 2, 1, 3)

    ql, kl, vl = split(q), split(k), split(v)
    ql = ql / math.sqrt(HD)
    scores = jnp.einsum("bhqd,bhkd->bhqk", ql, kl)
    scores = jnp.where(attention_mask, -jnp.inf, scores)   # torch masked_fill_(-inf)
    probs = jax.nn.softmax(scores.astype(jnp.float32), axis=-1)
    ctx = jnp.einsum("bhqk,bhkd->bhqd", probs, vl)
    ctx = ctx.transpose(0, 2, 1, 3).reshape(B, S, H)

    def ln(x, g, b):
        mu = jnp.mean(x, -1, keepdims=True)
        var = jnp.mean((x - mu) ** 2, -1, keepdims=True)
        return (x - mu) / jnp.sqrt(var + EPS) * g + b

    attn = ctx @ p["wo_t"] + p["bo"]
    attn_out = ln(attn + h, p["g1"], p["be1"])
    inter = jax.nn.gelu(attn_out @ p["wi_t"] + p["bi"], approximate=False)
    out = inter @ p["wo2_t"] + p["bo2"]
    return ln(out + attn_out, p["g2"], p["be2"])


if __name__ == "__main__":
    key = jax.random.PRNGKey(0)
    ks = jax.random.split(key, 16)
    s = 0.02

    params = {
        # linear weights pre-transposed to (in, out); biases as (1, out)
        "wq_t":  s * jax.random.normal(ks[0], (H, H), jnp.float32),
        "bq":    s * jax.random.normal(ks[1], (1, H), jnp.float32),
        "wk_t":  s * jax.random.normal(ks[2], (H, H), jnp.float32),
        "wv_t":  s * jax.random.normal(ks[3], (H, H), jnp.float32),
        "bv":    s * jax.random.normal(ks[4], (1, H), jnp.float32),
        "wo_t":  s * jax.random.normal(ks[5], (H, H), jnp.float32),
        "bo":    s * jax.random.normal(ks[6], (1, H), jnp.float32),
        "g1":    jnp.ones((1, H), jnp.float32),
        "be1":   jnp.zeros((1, H), jnp.float32),
        "wi_t":  s * jax.random.normal(ks[7], (H, I), jnp.float32),
        "bi":    s * jax.random.normal(ks[8], (1, I), jnp.float32),
        "wo2_t": s * jax.random.normal(ks[9], (I, H), jnp.float32),
        "bo2":   s * jax.random.normal(ks[10], (1, H), jnp.float32),
        "g2":    jnp.ones((1, H), jnp.float32),
        "be2":   jnp.zeros((1, H), jnp.float32),
    }

    hidden_states = jax.random.normal(ks[11], (B, S, H), jnp.float32)
    # key-padding mask: True = masked. Batch 0: all valid; batch 1: last 2 masked.
    pad = jnp.arange(S)[None, :] >= jnp.array([S, S - 2])[:, None]   # (B, S) bool
    attention_mask = pad.reshape(B, 1, 1, S)                         # for reference
    key_pad_mask = pad.astype(jnp.float32)                           # kernel input

    # NOTE: -1e30 additive mask vs torch's masked_fill(-inf): identical results for
    # any row with >=1 valid key (true here); fully-masked rows would give uniform
    # probs instead of NaN — intentional divergence.
    # TODO(synk): predict_hidden_states / rel_pos / key_unary / weight-standardization
    # branches are disabled by the chosen config (inputs None, flags 0/False) and
    # are not implemented.

    wslab = prepare_params(params)
    out = bert_layer(hidden_states, key_pad_mask, wslab)
    out = jax.block_until_ready(out)

    ref = reference(hidden_states, attention_mask, params)
    assert jnp.allclose(out, ref, atol=1e-3, rtol=1e-3), "mismatch vs JAX reference"

    print("KERNEL_OK")
</pallas_src>

<mosaic_0001>
module attributes {stable_mosaic.version = 11 : i64} {
  func.func @bert_layer_kernel(%arg0: memref<16x32xf32, #tpu.memory_space<vmem>>, %arg1: memref<2x8xf32, #tpu.memory_space<vmem>>, %arg2: memref<64x512xf32, #tpu.memory_space<vmem>>, %arg3: memref<16x32xf32, #tpu.memory_space<vmem>>) attributes {dimension_semantics = [], scalar_prefetch = 0 : i64, scratch_operands = 0 : i64, tpu.core_type = #tpu.core_type<tc>} {
    %c0 = arith.constant 0 : index
    %c0_0 = arith.constant 0 : index
    %0 = vector.load %arg0[%c0, %c0_0] : memref<16x32xf32, #tpu.memory_space<vmem>>, vector<16x32xf32>
    %c0_1 = arith.constant 0 : index
    %c0_2 = arith.constant 0 : index
    %1 = vector.load %arg2[%c0_1, %c0_2] : memref<64x512xf32, #tpu.memory_space<vmem>>, vector<32x96xf32>
    %c0_3 = arith.constant 0 : index
    %c128 = arith.constant 128 : index
    %2 = vector.load %arg2[%c0_3, %c128] : memref<64x512xf32, #tpu.memory_space<vmem>>, vector<32x32xf32>
    %c0_4 = arith.constant 0 : index
    %c384 = arith.constant 384 : index
    %3 = vector.load %arg2[%c0_4, %c384] : memref<64x512xf32, #tpu.memory_space<vmem>>, vector<64x32xf32>
    %c0_5 = arith.constant 0 : index
    %c256 = arith.constant 256 : index
    %4 = vector.load %arg2[%c0_5, %c256] : memref<64x512xf32, #tpu.memory_space<vmem>>, vector<32x64xf32>
    %c32 = arith.constant 32 : index
    %c0_6 = arith.constant 0 : index
    %5 = vector.load %arg2[%c32, %c0_6] : memref<64x512xf32, #tpu.memory_space<vmem>>, vector<8x128xf32>
    %6 = vector.extract_strided_slice %5 {offsets = [0, 0], sizes = [1, 96], strides = [1, 1]} : vector<8x128xf32> to vector<1x96xf32>
    %7 = vector.extract_strided_slice %5 {offsets = [1, 0], sizes = [1, 64], strides = [1, 1]} : vector<8x128xf32> to vector<1x64xf32>
    %8 = vector.extract_strided_slice %5 {offsets = [2, 0], sizes = [1, 32], strides = [1, 1]} : vector<8x128xf32> to vector<1x32xf32>
    %9 = vector.extract_strided_slice %5 {offsets = [3, 0], sizes = [1, 32], strides = [1, 1]} : vector<8x128xf32> to vector<1x32xf32>
    %10 = vector.extract_strided_slice %5 {offsets = [4, 0], sizes = [1, 32], strides = [1, 1]} : vector<8x128xf32> to vector<1x32xf32>
    %11 = vector.extract_strided_slice %5 {offsets = [5, 0], sizes = [1, 32], strides = [1, 1]} : vector<8x128xf32> to vector<1x32xf32>
    %12 = vector.extract_strided_slice %5 {offsets = [6, 0], sizes = [1, 32], strides = [1, 1]} : vector<8x128xf32> to vector<1x32xf32>
    %13 = vector.extract_strided_slice %5 {offsets = [7, 0], sizes = [1, 32], strides = [1, 1]} : vector<8x128xf32> to vector<1x32xf32>
    %cst = arith.constant dense<0.000000e+00> : vector<16x96xf32>
    %14 = tpu.matmul %0, %1, %cst {dimension_numbers = #tpu.dot_dimension_numbers<[1], [0], [0], [1], [0, 0, 1, 1], [], []>} : vector<16x32xf32>, vector<32x96xf32>, vector<16x96xf32> -> vector<16x96xf32>
    %15 = vector.broadcast %6 : vector<1x96xf32> to vector<16x96xf32>
    %16 = arith.addf %14, %15 : vector<16x96xf32>
    %17 = vector.extract_strided_slice %16 {offsets = [0, 0], sizes = [16, 32], strides = [1, 1]} : vector<16x96xf32> to vector<16x32xf32>
    %18 = vector.shape_cast %17 : vector<16x32xf32> to vector<2x8x4x8xf32>
    %19 = tpu.transpose %18, [0, 2, 1, 3] : vector<2x8x4x8xf32> -> vector<2x4x8x8xf32>
    %20 = vector.shape_cast %19 : vector<2x4x8x8xf32> to vector<8x8x8xf32>
    %21 = vector.extract_strided_slice %16 {offsets = [0, 32], sizes = [16, 32], strides = [1, 1]} : vector<16x96xf32> to vector<16x32xf32>
    %22 = vector.shape_cast %21 : vector<16x32xf32> to vector<2x8x4x8xf32>
    %23 = tpu.transpose %22, [0, 2, 1, 3] : vector<2x8x4x8xf32> -> vector<2x4x8x8xf32>
    %24 = vector.shape_cast %23 : vector<2x4x8x8xf32> to vector<8x8x8xf32>
    %25 = vector.extract_strided_slice %16 {offsets = [0, 64], sizes = [16, 32], strides = [1, 1]} : vector<16x96xf32> to vector<16x32xf32>
    %26 = vector.shape_cast %25 : vector<16x32xf32> to vector<2x8x4x8xf32>
    %27 = tpu.transpose %26, [0, 2, 1, 3] : vector<2x8x4x8xf32> -> vector<2x4x8x8xf32>
    %28 = vector.shape_cast %27 : vector<2x4x8x8xf32> to vector<8x8x8xf32>
    %c0_7 = arith.constant 0 : index
    %c0_8 = arith.constant 0 : index
    %29 = vector.load %arg1[%c0_7, %c0_8] : memref<2x8xf32, #tpu.memory_space<vmem>>, vector<2x8xf32>
    %cst_9 = arith.constant -1.000000e+30 : f32
    %30 = vector.broadcast %cst_9 : f32 to vector<2x8xf32>
    %31 = arith.mulf %29, %30 : vector<2x8xf32>
    %32 = vector.shape_cast %31 : vector<2x8xf32> to vector<2x1x1x8xf32>
    %33 = vector.shape_cast %32 : vector<2x1x1x8xf32> to vector<2x1x1x8xf32>
    %34 = vector.broadcast %33 : vector<2x1x1x8xf32> to vector<2x4x1x8xf32>
    %35 = vector.shape_cast %34 : vector<2x4x1x8xf32> to vector<8x1x8xf32>
    "tpu.trace_start"() <{level = 10 : i32, message = "bqd,bkd->bqk"}> : () -> ()
    %cst_10 = arith.constant dense<0.000000e+00> : vector<8x8x8xf32>
    %36 = tpu.matmul %20, %24, %cst_10 {dimension_numbers = #tpu.dot_dimension_numbers<[2], [2], [1], [1], [0, 0, 0, 1, 1, 1], [0], [0]>} : vector<8x8x8xf32>, vector<8x8x8xf32>, vector<8x8x8xf32> -> vector<8x8x8xf32>
    "tpu.trace_stop"() : () -> ()
    %37 = vector.broadcast %35 : vector<8x1x8xf32> to vector<8x8x8xf32>
    %38 = arith.addf %36, %37 : vector<8x8x8xf32>
    %cst_11 = arith.constant dense<0xFF800000> : vector<8x8xf32>
    %39 = vector.multi_reduction <maximumf>, %38, %cst_11 [2] : vector<8x8x8xf32> to vector<8x8xf32>
    %40 = vector.shape_cast %39 : vector<8x8xf32> to vector<8x8x1xf32>
    %41 = vector.broadcast %40 : vector<8x8x1xf32> to vector<8x8x8xf32>
    %42 = arith.subf %38, %41 : vector<8x8x8xf32>
    %43 = math.exp %42 : vector<8x8x8xf32>
    %cst_12 = arith.constant dense<0.000000e+00> : vector<8x8xf32>
    %44 = vector.multi_reduction <add>, %43, %cst_12 [2] : vector<8x8x8xf32> to vector<8x8xf32>
    %45 = vector.shape_cast %44 : vector<8x8xf32> to vector<8x8x1xf32>
    %46 = tpu.reciprocal %45 {approx = true} : vector<8x8x1xf32> -> vector<8x8x1xf32>
    %47 = arith.mulf %45, %46 : vector<8x8x1xf32>
    %cst_13 = arith.constant 2.000000e+00 : f32
    %48 = vector.broadcast %cst_13 : f32 to vector<8x8x1xf32>
    %49 = arith.subf %48, %47 : vector<8x8x1xf32>
    %50 = arith.mulf %46, %49 : vector<8x8x1xf32>
    %51 = vector.broadcast %50 : vector<8x8x1xf32> to vector<8x8x8xf32>
    %52 = arith.mulf %43, %51 : vector<8x8x8xf32>
    "tpu.trace_start"() <{level = 10 : i32, message = "bqk,bkd->bqd"}> : () -> ()
    %cst_14 = arith.constant dense<0.000000e+00> : vector<8x8x8xf32>
    %53 = tpu.matmul %52, %28, %cst_14 {dimension_numbers = #tpu.dot_dimension_numbers<[2], [1], [1], [2], [0, 0, 0, 1, 1, 2], [0], [0]>} : vector<8x8x8xf32>, vector<8x8x8xf32>, vector<8x8x8xf32> -> vector<8x8x8xf32>
    "tpu.trace_stop"() : () -> ()
    %54 = vector.shape_cast %53 : vector<8x8x8xf32> to vector<2x4x8x8xf32>
    %55 = tpu.transpose %54, [0, 2, 1, 3] : vector<2x4x8x8xf32> -> vector<2x8x4x8xf32>
    %56 = vector.shape_cast %55 : vector<2x8x4x8xf32> to vector<16x32xf32>
    %cst_15 = arith.constant dense<0.000000e+00> : vector<16x32xf32>
    %57 = tpu.matmul %56, %2, %cst_15 {dimension_numbers = #tpu.dot_dimension_numbers<[1], [0], [0], [1], [0, 0, 1, 1], [], []>} : vector<16x32xf32>, vector<32x32xf32>, vector<16x32xf32> -> vector<16x32xf32>
    %58 = vector.broadcast %8 : vector<1x32xf32> to vector<16x32xf32>
    %59 = arith.addf %57, %58 : vector<16x32xf32>
    %60 = arith.addf %59, %0 : vector<16x32xf32>
    %cst_16 = arith.constant dense<0.000000e+00> : vector<16xf32>
    %61 = vector.multi_reduction <add>, %60, %cst_16 [1] : vector<16x32xf32> to vector<16xf32>
    %62 = vector.shape_cast %61 : vector<16xf32> to vector<16x1xf32>
    %cst_17 = arith.constant 3.200000e+01 : f32
    %63 = vector.broadcast %cst_17 : f32 to vector<16x1xf32>
    %64 = arith.divf %62, %63 : vector<16x1xf32>
    %65 = vector.broadcast %64 : vector<16x1xf32> to vector<16x32xf32>
    %66 = arith.subf %60, %65 : vector<16x32xf32>
    %67 = arith.mulf %66, %66 : vector<16x32xf32>
    %cst_18 = arith.constant dense<0.000000e+00> : vector<16xf32>
    %68 = vector.multi_reduction <add>, %67, %cst_18 [1] : vector<16x32xf32> to vector<16xf32>
    %69 = vector.shape_cast %68 : vector<16xf32> to vector<16x1xf32>
    %cst_19 = arith.constant 3.200000e+01 : f32
    %70 = vector.broadcast %cst_19 : f32 to vector<16x1xf32>
    %71 = arith.divf %69, %70 : vector<16x1xf32>
    %72 = vector.broadcast %64 : vector<16x1xf32> to vector<16x32xf32>
    %73 = arith.subf %60, %72 : vector<16x32xf32>
    %cst_20 = arith.constant 9.99999974E-6 : f32
    %74 = vector.broadcast %cst_20 : f32 to vector<16x1xf32>
    %75 = arith.addf %71, %74 : vector<16x1xf32>
    %76 = math.rsqrt %75 : vector<16x1xf32>
    %77 = vector.broadcast %76 : vector<16x1xf32> to vector<16x32xf32>
    %78 = arith.mulf %73, %77 : vector<16x32xf32>
    %79 = vector.broadcast %9 : vector<1x32xf32> to vector<16x32xf32>
    %80 = arith.mulf %78, %79 : vector<16x32xf32>
    %81 = vector.broadcast %10 : vector<1x32xf32> to vector<16x32xf32>
    %82 = arith.addf %80, %81 : vector<16x32xf32>
    %cst_21 = arith.constant dense<0.000000e+00> : vector<16x64xf32>
    %83 = tpu.matmul %82, %4, %cst_21 {dimension_numbers = #tpu.dot_dimension_numbers<[1], [0], [0], [1], [0, 0, 1, 1], [], []>} : vector<16x32xf32>, vector<32x64xf32>, vector<16x64xf32> -> vector<16x64xf32>
    %84 = vector.broadcast %7 : vector<1x64xf32> to vector<16x64xf32>
    %85 = arith.addf %83, %84 : vector<16x64xf32>
    %cst_22 = arith.constant 5.000000e-01 : f32
    %86 = vector.broadcast %cst_22 : f32 to vector<16x64xf32>
    %87 = arith.mulf %86, %85 : vector<16x64xf32>
    %cst_23 = arith.constant 1.41421354 : f32
    %88 = vector.broadcast %cst_23 : f32 to vector<16x64xf32>
    %89 = arith.divf %85, %88 : vector<16x64xf32>
    %90 = math.erf %89 : vector<16x64xf32>
    %cst_24 = arith.constant 1.000000e+00 : f32
    %91 = vector.broadcast %cst_24 : f32 to vector<16x64xf32>
    %92 = arith.addf %91, %90 : vector<16x64xf32>
    %93 = arith.mulf %87, %92 : vector<16x64xf32>
    %cst_25 = arith.constant dense<0.000000e+00> : vector<16x32xf32>
    %94 = tpu.matmul %93, %3, %cst_25 {dimension_numbers = #tpu.dot_dimension_numbers<[1], [0], [0], [1], [0, 0, 1, 1], [], []>} : vector<16x64xf32>, vector<64x32xf32>, vector<16x32xf32> -> vector<16x32xf32>
    %95 = vector.broadcast %11 : vector<1x32xf32> to vector<16x32xf32>
    %96 = arith.addf %94, %95 : vector<16x32xf32>
    %97 = arith.addf %96, %82 : vector<16x32xf32>
    %cst_26 = arith.constant dense<0.000000e+00> : vector<16xf32>
    %98 = vector.multi_reduction <add>, %97, %cst_26 [1] : vector<16x32xf32> to vector<16xf32>
    %99 = vector.shape_cast %98 : vector<16xf32> to vector<16x1xf32>
    %cst_27 = arith.constant 3.200000e+01 : f32
    %100 = vector.broadcast %cst_27 : f32 to vector<16x1xf32>
    %101 = arith.divf %99, %100 : vector<16x1xf32>
    %102 = vector.broadcast %101 : vector<16x1xf32> to vector<16x32xf32>
    %103 = arith.subf %97, %102 : vector<16x32xf32>
    %104 = arith.mulf %103, %103 : vector<16x32xf32>
    %cst_28 = arith.constant dense<0.000000e+00> : vector<16xf32>
    %105 = vector.multi_reduction <add>, %104, %cst_28 [1] : vector<16x32xf32> to vector<16xf32>
    %106 = vector.shape_cast %105 : vector<16xf32> to vector<16x1xf32>
    %cst_29 = arith.constant 3.200000e+01 : f32
    %107 = vector.broadcast %cst_29 : f32 to vector<16x1xf32>
    %108 = arith.divf %106, %107 : vector<16x1xf32>
    %109 = vector.broadcast %101 : vector<16x1xf32> to vector<16x32xf32>
    %110 = arith.subf %97, %109 : vector<16x32xf32>
    %cst_30 = arith.constant 9.99999974E-6 : f32
    %111 = vector.broadcast %cst_30 : f32 to vector<16x1xf32>
    %112 = arith.addf %108, %111 : vector<16x1xf32>
    %113 = math.rsqrt %112 : vector<16x1xf32>
    %114 = vector.broadcast %113 : vector<16x1xf32> to vector<16x32xf32>
    %115 = arith.mulf %110, %114 : vector<16x32xf32>
    %116 = vector.broadcast %12 : vector<1x32xf32> to vector<16x32xf32>
    %117 = arith.mulf %115, %116 : vector<16x32xf32>
    %118 = vector.broadcast %13 : vector<1x32xf32> to vector<16x32xf32>
    %119 = arith.addf %117, %118 : vector<16x32xf32>
    %c0_31 = arith.constant 0 : index
    %c0_32 = arith.constant 0 : index
    %120 = vector.load %arg3[%c0_31, %c0_32] : memref<16x32xf32, #tpu.memory_space<vmem>>, vector<16x32xf32>
    tpu.vector_store %arg3[%c0_31, %c0_32], %119 {strides = array<i32>} : memref<16x32xf32, #tpu.memory_space<vmem>>, vector<16x32xf32>,
    return
  }
}

</mosaic_0001>

<llo_original>
// kernel: bert_layer.1
$region0: #{bert_layer.1}
  #allocation0 [shape = 'u32[]', space=smem, size = 0x4, offset = 0x4, fixed_abs, tag = 'smem constant byte address 0x4 - core index']
  #allocation1 [shape = 'u32[72,128]{1,0:T(1,128)}', space=vmem, size = 0x9000, scoped, tag = 'internal scratch']
  %s0 = inlined_call_operand.hbm [shape: f32[16,32], index: 0, kind: input, shape index: {}]
  %s1 = inlined_call_operand.hbm [shape: f32[2,8], index: 1, kind: input, shape index: {}]
  %s2 = inlined_call_operand.hbm [shape: f32[64,512], index: 2, kind: input, shape index: {}]
  %s3 = inlined_call_operand.hbm [shape: f32[16,32], index: 3, kind: output, shape index: {}]
  %s4 = sld [smem:[#allocation0]]
  $region34: #{bert_layer.1} parent=0
    _
  %s6 = ssub.s32 1, %s4
  %s7 = scalar_select 0, %s6, %s4
  $region1: #{bert_layer.1} parent=0
    #allocation2 [shape = 'u8[8192]{0}', space=vmem, size = 0x2000, scoped, tag = 'input window, operand 0, single buffered']
    #allocation3 [shape = 's32[1]{0}', space=sflag, size = 0x4, scoped, tag = 'scoped memory for bert_layer.1']
    #allocation4 [shape = 's32[1]{0}', space=sflag, size = 0x4, scoped, tag = 'scoped memory for bert_layer.1']
    #allocation5 [shape = 'u8[1024]{0}', space=vmem, size = 0x400, scoped, tag = 'input window, operand 1, single buffered']
    #allocation6 [shape = 's32[1]{0}', space=sflag, size = 0x4, scoped, tag = 'scoped memory for bert_layer.1']
    #allocation7 [shape = 'u8[131072]{0}', space=vmem, size = 0x20000, scoped, tag = 'input window, operand 2, single buffered']
    #allocation8 [shape = 'u8[8192]{0}', space=vmem, size = 0x2000, scoped, tag = 'output window, operand 0, single buffered']
    %8 = vsyncpa [#allocation3], 0
    %9 = vsyncpa [#allocation6], 0
    %10 = vsyncpa [#allocation4], 0
    // Predicated region
    $region2: #{bert_layer.1} parent=1 // pred_check
      _
    $region3: #{bert_layer.1} parent=1 // pred_check_branch
      %12 = sbr.rel (0) target = $region5
    $region4: #{bert_layer.1} parent=1 // pred_region
      %14 = vsyncadd [#allocation3], 0
      %s15 = sshll.u32 %s0, 4
      %s16 = int_to_ptr.hbm [resolvable:$true] %s15
      %s17 = sshll.u32 [#allocation2], 4
      %s18 = int_to_ptr.vmem [resolvable:$true] %s17
      %23 = dma.hbm_to_vmem [thread:$0]  %s16, 256, %s18, [#allocation3], 128, 128, 8
    $region5: #{bert_layer.1} parent=1 // pred_fallthru
      _
    // Predicated region
    $region6: #{bert_layer.1} parent=1 // pred_check
      _
    $region7: #{bert_layer.1} parent=1 // pred_check_branch
      %25 = sbr.rel (0) target = $region9
    $region8: #{bert_layer.1} parent=1 // pred_region
      %27 = vsyncadd [#allocation6], 0
      %s29 = sshll.u32 %s1, 4
      %s30 = int_to_ptr.hbm [resolvable:$true] %s29
      %s31 = sshll.u32 [#allocation5], 4
      %s32 = int_to_ptr.vmem [resolvable:$true] %s31
      %34 = dma.hbm_to_vmem [thread:$0]  %s30, 32, %s32, [#allocation6]
    $region9: #{bert_layer.1} parent=1 // pred_fallthru
      _
    // Predicated region
    $region10: #{bert_layer.1} parent=1 // pred_check
      _
    $region11: #{bert_layer.1} parent=1 // pred_check_branch
      %36 = sbr.rel (0) target = $region13
    $region12: #{bert_layer.1} parent=1 // pred_region
      %38 = vsyncadd [#allocation6], 0
      %s39 = sshll.u32 %s2, 4
      %s40 = int_to_ptr.hbm [resolvable:$true] %s39
      %s41 = sshll.u32 [#allocation7], 4
      %s42 = int_to_ptr.vmem [resolvable:$true] %s41
      %47 = dma.hbm_to_vmem [thread:$0]  %s40, 4096, %s42, [#allocation6], 512, 512, 32
    $region13: #{bert_layer.1} parent=1 // pred_fallthru
      _
    // Predicated region
    $region14: #{bert_layer.1} parent=1 // pred_check
      _
    $region15: #{bert_layer.1} parent=1 // pred_check_branch
      %49 = sbr.rel (0) target = $region17
    $region16: #{bert_layer.1} parent=1 // pred_region
      %51 = dma.done [#allocation3], 256
    $region17: #{bert_layer.1} parent=1 // pred_fallthru
      _
    // Predicated region
    $region18: #{bert_layer.1} parent=1 // pred_check
      _
    $region19: #{bert_layer.1} parent=1 // pred_check_branch
      %53 = sbr.rel (0) target = $region21
    $region20: #{bert_layer.1} parent=1 // pred_region
      %55 = dma.done [#allocation6], 32
    $region21: #{bert_layer.1} parent=1 // pred_fallthru
      _
    // Predicated region
    $region22: #{bert_layer.1} parent=1 // pred_check
      _
    $region23: #{bert_layer.1} parent=1 // pred_check_branch
      %57 = sbr.rel (0) target = $region25
    $region24: #{bert_layer.1} parent=1 // pred_region
      %59 = dma.done [#allocation6], 4096
    $region25: #{bert_layer.1} parent=1 // pred_fallthru
      _
    %v60 = vld [vmem:[#allocation2] sm:$0xff]
    %v61 = vld [vmem:[#allocation2 + $0x8] sm:$0xff]
    %v62 = vld [vmem:[#allocation7] sm:$0xff]
    %v63 = vld [vmem:[#allocation7 + $0x20] sm:$0xff]
    %v64 = vld [vmem:[#allocation7 + $0x40] sm:$0xff]
    %v65 = vld [vmem:[#allocation7 + $0x60] sm:$0xff]
    %v66 = vld [vmem:[#allocation7 + $0x8] sm:$0xff]
    %v67 = vld [vmem:[#allocation7 + $0x28] sm:$0xff]
    %v68 = vld [vmem:[#allocation7 + $0x48] sm:$0xff]
    %v69 = vld [vmem:[#allocation7 + $0x68] sm:$0xff]
    %v70 = vld [vmem:[#allocation7 + $0x18] sm:$0xff]
    %v71 = vld [vmem:[#allocation7 + $0x38] sm:$0xff]
    %v72 = vld [vmem:[#allocation7 + $0x58] sm:$0xff]
    %v73 = vld [vmem:[#allocation7 + $0x78] sm:$0xff]
    %v74 = vld [vmem:[#allocation7 + $0x98] sm:$0xff]
    %v75 = vld [vmem:[#allocation7 + $0xb8] sm:$0xff]
    %v76 = vld [vmem:[#allocation7 + $0xd8] sm:$0xff]
    %v77 = vld [vmem:[#allocation7 + $0xf8] sm:$0xff]
    %v78 = vld [vmem:[#allocation7 + $0x10] sm:$0xff]
    %v79 = vld [vmem:[#allocation7 + $0x30] sm:$0xff]
    %v80 = vld [vmem:[#allocation7 + $0x50] sm:$0xff]
    %v81 = vld [vmem:[#allocation7 + $0x70] sm:$0xff]
    %v82 = vld [vmem:[#allocation7 + $0x80] sm:$0xff]
    %v83 = vperm.slane %v82, 0
    %vm84 = vcmask 261120
    %v86 = vsel %vm84, %v60, 0
    %v89 = vsel %vm84, %v61, 0
    %91 = vmatpush.msra.mxu0 0.0
    %92 = vmatpush.msra.mxu0 0.0
    %93 = vmatpush.msra.mxu0 0.0
    %94 = vmatpush.msra.mxu0 0.0
    %95 = vmatpush.msra.mxu0 0.0
    %96 = vmatpush.msra.mxu0 0.0
    %97 = vmatpush.msra.mxu0 0.0
    %98 = vmatpush.msra.mxu0 0.0
    %99 = vmatpush.msra.mxu0 0.0
    %100 = vmatpush.msra.mxu0 0.0
    %101 = vmatpush.msra.mxu0 0.0
    %102 = vmatpush.msra.mxu0 0.0
    %103 = vmatpush.msra.mxu0 %v65
    %104 = vmatpush.msra.mxu0 %v64
    %105 = vmatpush.msra.mxu0 %v63
    %106 = vmatpush.msra.mxu0 %v62
    %107 = vmatmul.f32.gmra.mxu0 %v86
    %v108 = vpop.f32.mrf.mxu0
    %v109 = vadd.f32 %v83, %v108
    %110 = vmatmul.f32.gmra.mxu0 %v89
    %v111 = vpop.f32.mrf.mxu0
    %v112 = vadd.f32 %v83, %v111
    %113 = vdwg.mxu0
    %116 = vrot.lane.b32.xlu0 %v109, 120
    %v117 = vpop.permute.xlu0 %116
    %118 = vrot.lane.b32.xlu0 %v112, 120
    %v119 = vpop.permute.xlu0 %118
    %122 = vrot.lane.b32.xlu0 %v109, 112
    %v123 = vpop.permute.xlu0 %122
    %124 = vrot.lane.b32.xlu0 %v112, 112
    %v125 = vpop.permute.xlu0 %124
    %128 = vrot.lane.b32.xlu0 %v109, 104
    %v129 = vpop.permute.xlu0 %128
    %130 = vrot.lane.b32.xlu0 %v112, 104
    %v131 = vpop.permute.xlu0 %130
    %v134 = vrot.slane %v123, 4
    %vm135 = vcmask 1047556
    %v136 = vsel %vm135, %v134, %v109
    %v137 = vrot.slane %v109, 4
    %v138 = vsel %vm135, %v123, %v137
    %v140 = vunpack.c.l.s4 1983009808
    %v141 = vunpack.c.0.s8 %v140
    %v142 = vperm.slane %v136, %v141
    %v144 = vunpack.c.l.s4 1983009808
    %v145 = vunpack.c.0.s8 %v144
    %v146 = vperm.slane %v138, %v145
    %v147 = vrot.slane %v129, 4
    %v148 = vsel %vm135, %v147, %v117
    %v149 = vrot.slane %v117, 4
    %v150 = vsel %vm135, %v129, %v149
    %v152 = vunpack.c.l.s4 1983009808
    %v153 = vunpack.c.0.s8 %v152
    %v154 = vperm.slane %v148, %v153
    %v156 = vunpack.c.l.s4 1983009808
    %v157 = vunpack.c.0.s8 %v156
    %v158 = vperm.slane %v150, %v157
    %v159 = vrot.slane %v154, 4
    %v160 = vsel %vm135, %v159, %v142
    %v161 = vrot.slane %v142, 4
    %v162 = vsel %vm135, %v154, %v161
    %v164 = vunpack.c.l.s4 1934713408
    %v165 = vunpack.c.0.s8 %v164
    %v166 = vperm.slane %v160, %v165
    %v168 = vunpack.c.l.s4 1934713408
    %v169 = vunpack.c.0.s8 %v168
    %v170 = vperm.slane %v162, %v169
    %v171 = vrot.slane %v158, 4
    %v172 = vsel %vm135, %v171, %v146
    %v173 = vrot.slane %v146, 4
    %v174 = vsel %vm135, %v158, %v173
    %v176 = vunpack.c.l.s4 1934713408
    %v177 = vunpack.c.0.s8 %v176
    %v178 = vperm.slane %v172, %v177
    %v180 = vunpack.c.l.s4 1934713408
    %v181 = vunpack.c.0.s8 %v180
    %v182 = vperm.slane %v174, %v181
    %v183 = vrot.slane %v166, 4
    %v184 = vsel %vm135, 0.0, %v183
    %v185 = vrot.slane %v170, 4
    %v186 = vsel %vm135, 0.0, %v185
    %v187 = vrot.slane %v178, 4
    %v188 = vsel %vm135, 0.0, %v187
    %v189 = vrot.slane %v182, 4
    %v190 = vsel %vm135, 0.0, %v189
    %v191 = vrot.slane %v125, 4
    %v192 = vsel %vm135, %v191, %v112
    %v193 = vrot.slane %v112, 4
    %v194 = vsel %vm135, %v125, %v193
    %v196 = vunpack.c.l.s4 1983009808
    %v197 = vunpack.c.0.s8 %v196
    %v198 = vperm.slane %v192, %v197
    %v200 = vunpack.c.l.s4 1983009808
    %v201 = vunpack.c.0.s8 %v200
    %v202 = vperm.slane %v194, %v201
    %v203 = vrot.slane %v131, 4
    %v204 = vsel %vm135, %v203, %v119
    %v205 = vrot.slane %v119, 4
    %v206 = vsel %vm135, %v131, %v205
    %v208 = vunpack.c.l.s4 1983009808
    %v209 = vunpack.c.0.s8 %v208
    %v210 = vperm.slane %v204, %v209
    %v212 = vunpack.c.l.s4 1983009808
    %v213 = vunpack.c.0.s8 %v212
    %v214 = vperm.slane %v206, %v213
    %v215 = vrot.slane %v210, 4
    %v216 = vsel %vm135, %v215, %v198
    %v217 = vrot.slane %v198, 4
    %v218 = vsel %vm135, %v210, %v217
    %v220 = vunpack.c.l.s4 1934713408
    %v221 = vunpack.c.0.s8 %v220
    %v222 = vperm.slane %v216, %v221
    %v224 = vunpack.c.l.s4 1934713408
    %v225 = vunpack.c.0.s8 %v224
    %v226 = vperm.slane %v218, %v225
    %v227 = vrot.slane %v214, 4
    %v228 = vsel %vm135, %v227, %v202
    %v229 = vrot.slane %v202, 4
    %v230 = vsel %vm135, %v214, %v229
    %v232 = vunpack.c.l.s4 1934713408
    %v233 = vunpack.c.0.s8 %v232
    %v234 = vperm.slane %v228, %v233
    %v236 = vunpack.c.l.s4 1934713408
    %v237 = vunpack.c.0.s8 %v236
    %v238 = vperm.slane %v230, %v237
    %v239 = vrot.slane %v222, 4
    %v240 = vsel %vm135, 0.0, %v239
    %v241 = vrot.slane %v226, 4
    %v242 = vsel %vm135, 0.0, %v241
    %v243 = vrot.slane %v234, 4
    %v244 = vsel %vm135, 0.0, %v243
    %v245 = vrot.slane %v238, 4
    %v246 = vsel %vm135, 0.0, %v245
    %v247 = vsel %vm135, %v185, %v166
    %v249 = vunpack.c.l.s4 1983009808
    %v250 = vunpack.c.0.s8 %v249
    %v251 = vperm.slane %v247, %v250
    %v252 = vrot.slane %v186, 4
    %v253 = vsel %vm135, %v252, %v184
    %v255 = vunpack.c.l.s4 1983009808
    %v256 = vunpack.c.0.s8 %v255
    %v257 = vperm.slane %v253, %v256
    %v258 = vsel %vm135, %v189, %v178
    %v260 = vunpack.c.l.s4 1983009808
    %v261 = vunpack.c.0.s8 %v260
    %v262 = vperm.slane %v258, %v261
    %v263 = vrot.slane %v190, 4
    %v264 = vsel %vm135, %v263, %v188
    %v266 = vunpack.c.l.s4 1983009808
    %v267 = vunpack.c.0.s8 %v266
    %v268 = vperm.slane %v264, %v267
    %v269 = vrot.slane %v257, 4
    %v270 = vsel %vm135, %v269, %v251
    %v271 = vrot.slane %v251, 4
    %v272 = vsel %vm135, %v257, %v271
    %v274 = vunpack.c.l.s4 1934713408
    %v275 = vunpack.c.0.s8 %v274
    %v276 = vperm.slane %v270, %v275
    %v278 = vunpack.c.l.s4 1934713408
    %v279 = vunpack.c.0.s8 %v278
    %v280 = vperm.slane %v272, %v279
    %v281 = vrot.slane %v268, 4
    %v282 = vsel %vm135, %v281, %v262
    %v283 = vrot.slane %v262, 4
    %v284 = vsel %vm135, %v268, %v283
    %v286 = vunpack.c.l.s4 1934713408
    %v287 = vunpack.c.0.s8 %v286
    %v288 = vperm.slane %v282, %v287
    %v290 = vunpack.c.l.s4 1934713408
    %v291 = vunpack.c.0.s8 %v290
    %v292 = vperm.slane %v284, %v291
    %v293 = vrot.slane %v288, 4
    %v294 = vsel %vm135, %v293, %v276
    %v295 = vrot.slane %v276, 4
    %v296 = vsel %vm135, %v288, %v295
    %v297 = vrot.slane %v292, 4
    %v298 = vsel %vm135, %v297, %v280
    %v299 = vrot.slane %v280, 4
    %v300 = vsel %vm135, %v292, %v299
    %v301 = vsel %vm135, %v241, %v222
    %v303 = vunpack.c.l.s4 1983009808
    %v304 = vunpack.c.0.s8 %v303
    %v305 = vperm.slane %v301, %v304
    %v306 = vrot.slane %v242, 4
    %v307 = vsel %vm135, %v306, %v240
    %v309 = vunpack.c.l.s4 1983009808
    %v310 = vunpack.c.0.s8 %v309
    %v311 = vperm.slane %v307, %v310
    %v312 = vsel %vm135, %v245, %v234
    %v314 = vunpack.c.l.s4 1983009808
    %v315 = vunpack.c.0.s8 %v314
    %v316 = vperm.slane %v312, %v315
    %v317 = vrot.slane %v246, 4
    %v318 = vsel %vm135, %v317, %v244
    %v320 = vunpack.c.l.s4 1983009808
    %v321 = vunpack.c.0.s8 %v320
    %v322 = vperm.slane %v318, %v321
    %v323 = vrot.slane %v311, 4
    %v324 = vsel %vm135, %v323, %v305
    %v325 = vrot.slane %v305, 4
    %v326 = vsel %vm135, %v311, %v325
    %v328 = vunpack.c.l.s4 1934713408
    %v329 = vunpack.c.0.s8 %v328
    %v330 = vperm.slane %v324, %v329
    %v332 = vunpack.c.l.s4 1934713408
    %v333 = vunpack.c.0.s8 %v332
    %v334 = vperm.slane %v326, %v333
    %v335 = vrot.slane %v322, 4
    %v336 = vsel %vm135, %v335, %v316
    %v337 = vrot.slane %v316, 4
    %v338 = vsel %vm135, %v322, %v337
    %v340 = vunpack.c.l.s4 1934713408
    %v341 = vunpack.c.0.s8 %v340
    %v342 = vperm.slane %v336, %v341
    %v344 = vunpack.c.l.s4 1934713408
    %v345 = vunpack.c.0.s8 %v344
    %v346 = vperm.slane %v338, %v345
    %v347 = vrot.slane %v342, 4
    %v348 = vsel %vm135, %v347, %v330
    %v349 = vrot.slane %v330, 4
    %v350 = vsel %vm135, %v342, %v349
    %v351 = vrot.slane %v346, 4
    %v352 = vsel %vm135, %v351, %v334
    %v353 = vrot.slane %v334, 4
    %v354 = vsel %vm135, %v346, %v353
    %355 = vrot.lane.b32.xlu0 %v109, 96
    %v356 = vpop.permute.xlu0 %355
    %357 = vrot.lane.b32.xlu0 %v112, 96
    %v358 = vpop.permute.xlu0 %357
    %359 = vrot.lane.b32.xlu0 %v117, 96
    %v360 = vpop.permute.xlu0 %359
    %361 = vrot.lane.b32.xlu0 %v119, 96
    %v362 = vpop.permute.xlu0 %361
    %363 = vrot.lane.b32.xlu0 %v123, 96
    %v364 = vpop.permute.xlu0 %363
    %365 = vrot.lane.b32.xlu0 %v125, 96
    %v366 = vpop.permute.xlu0 %365
    %367 = vrot.lane.b32.xlu0 %v129, 96
    %v368 = vpop.permute.xlu0 %367
    %369 = vrot.lane.b32.xlu0 %v131, 96
    %v370 = vpop.permute.xlu0 %369
    %v379 = vrot.slane %v364, 4
    %v380 = vsel %vm135, %v379, %v356
    %v381 = vrot.slane %v356, 4
    %v382 = vsel %vm135, %v364, %v381
    %v384 = vunpack.c.l.s4 1983009808
    %v385 = vunpack.c.0.s8 %v384
    %v386 = vperm.slane %v380, %v385
    %v388 = vunpack.c.l.s4 1983009808
    %v389 = vunpack.c.0.s8 %v388
    %v390 = vperm.slane %v382, %v389
    %v391 = vrot.slane %v368, 4
    %v392 = vsel %vm135, %v391, %v360
    %v393 = vrot.slane %v360, 4
    %v394 = vsel %vm135, %v368, %v393
    %v396 = vunpack.c.l.s4 1983009808
    %v397 = vunpack.c.0.s8 %v396
    %v398 = vperm.slane %v392, %v397
    %v400 = vunpack.c.l.s4 1983009808
    %v401 = vunpack.c.0.s8 %v400
    %v402 = vperm.slane %v394, %v401
    %v403 = vrot.slane %v398, 4
    %v404 = vsel %vm135, %v403, %v386
    %v405 = vrot.slane %v386, 4
    %v406 = vsel %vm135, %v398, %v405
    %v408 = vunpack.c.l.s4 1934713408
    %v409 = vunpack.c.0.s8 %v408
    %v410 = vperm.slane %v404, %v409
    %v412 = vunpack.c.l.s4 1934713408
    %v413 = vunpack.c.0.s8 %v412
    %v414 = vperm.slane %v406, %v413
    %v415 = vrot.slane %v402, 4
    %v416 = vsel %vm135, %v415, %v390
    %v417 = vrot.slane %v390, 4
    %v418 = vsel %vm135, %v402, %v417
    %v420 = vunpack.c.l.s4 1934713408
    %v421 = vunpack.c.0.s8 %v420
    %v422 = vperm.slane %v416, %v421
    %v424 = vunpack.c.l.s4 1934713408
    %v425 = vunpack.c.0.s8 %v424
    %v426 = vperm.slane %v418, %v425
    %v427 = vrot.slane %v410, 4
    %v428 = vsel %vm135, 0.0, %v427
    %v429 = vrot.slane %v414, 4
    %v430 = vsel %vm135, 0.0, %v429
    %v431 = vrot.slane %v422, 4
    %v432 = vsel %vm135, 0.0, %v431
    %v433 = vrot.slane %v426, 4
    %v434 = vsel %vm135, 0.0, %v433
    %v435 = vrot.slane %v366, 4
    %v436 = vsel %vm135, %v435, %v358
    %v437 = vrot.slane %v358, 4
    %v438 = vsel %vm135, %v366, %v437
    %v440 = vunpack.c.l.s4 1983009808
    %v441 = vunpack.c.0.s8 %v440
    %v442 = vperm.slane %v436, %v441
    %v444 = vunpack.c.l.s4 1983009808
    %v445 = vunpack.c.0.s8 %v444
    %v446 = vperm.slane %v438, %v445
    %v447 = vrot.slane %v370, 4
    %v448 = vsel %vm135, %v447, %v362
    %v449 = vrot.slane %v362, 4
    %v450 = vsel %vm135, %v370, %v449
    %v452 = vunpack.c.l.s4 1983009808
    %v453 = vunpack.c.0.s8 %v452
    %v454 = vperm.slane %v448, %v453
    %v456 = vunpack.c.l.s4 1983009808
    %v457 = vunpack.c.0.s8 %v456
    %v458 = vperm.slane %v450, %v457
    %v459 = vrot.slane %v454, 4
    %v460 = vsel %vm135, %v459, %v442
    %v461 = vrot.slane %v442, 4
    %v462 = vsel %vm135, %v454, %v461
    %v464 = vunpack.c.l.s4 1934713408
    %v465 = vunpack.c.0.s8 %v464
    %v466 = vperm.slane %v460, %v465
    %v468 = vunpack.c.l.s4 1934713408
    %v469 = vunpack.c.0.s8 %v468
    %v470 = vperm.slane %v462, %v469
    %v471 = vrot.slane %v458, 4
    %v472 = vsel %vm135, %v471, %v446
    %v473 = vrot.slane %v446, 4
    %v474 = vsel %vm135, %v458, %v473
    %v476 = vunpack.c.l.s4 1934713408
    %v477 = vunpack.c.0.s8 %v476
    %v478 = vperm.slane %v472, %v477
    %v480 = vunpack.c.l.s4 1934713408
    %v481 = vunpack.c.0.s8 %v480
    %v482 = vperm.slane %v474, %v481
    %v483 = vrot.slane %v466, 4
    %v484 = vsel %vm135, 0.0, %v483
    %v485 = vrot.slane %v470, 4
    %v486 = vsel %vm135, 0.0, %v485
    %v487 = vrot.slane %v478, 4
    %v488 = vsel %vm135, 0.0, %v487
    %v489 = vrot.slane %v482, 4
    %v490 = vsel %vm135, 0.0, %v489
    %v491 = vsel %vm135, %v429, %v410
    %v493 = vunpack.c.l.s4 1983009808
    %v494 = vunpack.c.0.s8 %v493
    %v495 = vperm.slane %v491, %v494
    %v496 = vrot.slane %v430, 4
    %v497 = vsel %vm135, %v496, %v428
    %v499 = vunpack.c.l.s4 1983009808
    %v500 = vunpack.c.0.s8 %v499
    %v501 = vperm.slane %v497, %v500
    %v502 = vsel %vm135, %v433, %v422
    %v504 = vunpack.c.l.s4 1983009808
    %v505 = vunpack.c.0.s8 %v504
    %v506 = vperm.slane %v502, %v505
    %v507 = vrot.slane %v434, 4
    %v508 = vsel %vm135, %v507, %v432
    %v510 = vunpack.c.l.s4 1983009808
    %v511 = vunpack.c.0.s8 %v510
    %v512 = vperm.slane %v508, %v511
    %v513 = vrot.slane %v501, 4
    %v514 = vsel %vm135, %v513, %v495
    %v515 = vrot.slane %v495, 4
    %v516 = vsel %vm135, %v501, %v515
    %v518 = vunpack.c.l.s4 1934713408
    %v519 = vunpack.c.0.s8 %v518
    %v520 = vperm.slane %v514, %v519
    %v522 = vunpack.c.l.s4 1934713408
    %v523 = vunpack.c.0.s8 %v522
    %v524 = vperm.slane %v516, %v523
    %v525 = vrot.slane %v512, 4
    %v526 = vsel %vm135, %v525, %v506
    %v527 = vrot.slane %v506, 4
    %v528 = vsel %vm135, %v512, %v527
    %v530 = vunpack.c.l.s4 1934713408
    %v531 = vunpack.c.0.s8 %v530
    %v532 = vperm.slane %v526, %v531
    %v534 = vunpack.c.l.s4 1934713408
    %v535 = vunpack.c.0.s8 %v534
    %v536 = vperm.slane %v528, %v535
    %v537 = vrot.slane %v532, 4
    %v538 = vsel %vm135, %v537, %v520
    %v539 = vrot.slane %v520, 4
    %v540 = vsel %vm135, %v532, %v539
    %v541 = vrot.slane %v536, 4
    %v542 = vsel %vm135, %v541, %v524
    %v543 = vrot.slane %v524, 4
    %v544 = vsel %vm135, %v536, %v543
    %v545 = vsel %vm135, %v485, %v466
    %v547 = vunpack.c.l.s4 1983009808
    %v548 = vunpack.c.0.s8 %v547
    %v549 = vperm.slane %v545, %v548
    %v550 = vrot.slane %v486, 4
    %v551 = vsel %vm135, %v550, %v484
    %v553 = vunpack.c.l.s4 1983009808
    %v554 = vunpack.c.0.s8 %v553
    %v555 = vperm.slane %v551, %v554
    %v556 = vsel %vm135, %v489, %v478
    %v558 = vunpack.c.l.s4 1983009808
    %v559 = vunpack.c.0.s8 %v558
    %v560 = vperm.slane %v556, %v559
    %v561 = vrot.slane %v490, 4
    %v562 = vsel %vm135, %v561, %v488
    %v564 = vunpack.c.l.s4 1983009808
    %v565 = vunpack.c.0.s8 %v564
    %v566 = vperm.slane %v562, %v565
    %v567 = vrot.slane %v555, 4
    %v568 = vsel %vm135, %v567, %v549
    %v569 = vrot.slane %v549, 4
    %v570 = vsel %vm135, %v555, %v569
    %v572 = vunpack.c.l.s4 1934713408
    %v573 = vunpack.c.0.s8 %v572
    %v574 = vperm.slane %v568, %v573
    %v576 = vunpack.c.l.s4 1934713408
    %v577 = vunpack.c.0.s8 %v576
    %v578 = vperm.slane %v570, %v577
    %v579 = vrot.slane %v566, 4
    %v580 = vsel %vm135, %v579, %v560
    %v581 = vrot.slane %v560, 4
    %v582 = vsel %vm135, %v566, %v581
    %v584 = vunpack.c.l.s4 1934713408
    %v585 = vunpack.c.0.s8 %v584
    %v586 = vperm.slane %v580, %v585
    %v588 = vunpack.c.l.s4 1934713408
    %v589 = vunpack.c.0.s8 %v588
    %v590 = vperm.slane %v582, %v589
    %v591 = vrot.slane %v586, 4
    %v592 = vsel %vm135, %v591, %v574
    %v593 = vrot.slane %v574, 4
    %v594 = vsel %vm135, %v586, %v593
    %v595 = vrot.slane %v590, 4
    %v596 = vsel %vm135, %v595, %v578
    %v597 = vrot.slane %v578, 4
    %v598 = vsel %vm135, %v590, %v597
    %599 = vrot.lane.b32.xlu0 %v109, 64
    %v600 = vpop.permute.xlu0 %599
    %601 = vrot.lane.b32.xlu0 %v112, 64
    %v602 = vpop.permute.xlu0 %601
    %603 = vrot.lane.b32.xlu0 %v117, 64
    %v604 = vpop.permute.xlu0 %603
    %605 = vrot.lane.b32.xlu0 %v119, 64
    %v606 = vpop.permute.xlu0 %605
    %607 = vrot.lane.b32.xlu0 %v123, 64
    %v608 = vpop.permute.xlu0 %607
    %609 = vrot.lane.b32.xlu0 %v125, 64
    %v610 = vpop.permute.xlu0 %609
    %611 = vrot.lane.b32.xlu0 %v129, 64
    %v612 = vpop.permute.xlu0 %611
    %613 = vrot.lane.b32.xlu0 %v131, 64
    %v614 = vpop.permute.xlu0 %613
    %v623 = vrot.slane %v608, 4
    %v624 = vsel %vm135, %v623, %v600
    %v625 = vrot.slane %v600, 4
    %v626 = vsel %vm135, %v608, %v625
    %v628 = vunpack.c.l.s4 1983009808
    %v629 = vunpack.c.0.s8 %v628
    %v630 = vperm.slane %v624, %v629
    %v632 = vunpack.c.l.s4 1983009808
    %v633 = vunpack.c.0.s8 %v632
    %v634 = vperm.slane %v626, %v633
    %v635 = vrot.slane %v612, 4
    %v636 = vsel %vm135, %v635, %v604
    %v637 = vrot.slane %v604, 4
    %v638 = vsel %vm135, %v612, %v637
    %v640 = vunpack.c.l.s4 1983009808
    %v641 = vunpack.c.0.s8 %v640
    %v642 = vperm.slane %v636, %v641
    %v644 = vunpack.c.l.s4 1983009808
    %v645 = vunpack.c.0.s8 %v644
    %v646 = vperm.slane %v638, %v645
    %v647 = vrot.slane %v642, 4
    %v648 = vsel %vm135, %v647, %v630
    %v649 = vrot.slane %v630, 4
    %v650 = vsel %vm135, %v642, %v649
    %v652 = vunpack.c.l.s4 1934713408
    %v653 = vunpack.c.0.s8 %v652
    %v654 = vperm.slane %v648, %v653
    %v656 = vunpack.c.l.s4 1934713408
    %v657 = vunpack.c.0.s8 %v656
    %v658 = vperm.slane %v650, %v657
    %v659 = vrot.slane %v646, 4
    %v660 = vsel %vm135, %v659, %v634
    %v661 = vrot.slane %v634, 4
    %v662 = vsel %vm135, %v646, %v661
    %v664 = vunpack.c.l.s4 1934713408
    %v665 = vunpack.c.0.s8 %v664
    %v666 = vperm.slane %v660, %v665
    %v668 = vunpack.c.l.s4 1934713408
    %v669 = vunpack.c.0.s8 %v668
    %v670 = vperm.slane %v662, %v669
    %v671 = vrot.slane %v654, 4
    %v672 = vsel %vm135, 0.0, %v671
    %v673 = vrot.slane %v658, 4
    %v674 = vsel %vm135, 0.0, %v673
    %v675 = vrot.slane %v666, 4
    %v676 = vsel %vm135, 0.0, %v675
    %v677 = vrot.slane %v670, 4
    %v678 = vsel %vm135, 0.0, %v677
    %v679 = vrot.slane %v610, 4
    %v680 = vsel %vm135, %v679, %v602
    %v681 = vrot.slane %v602, 4
    %v682 = vsel %vm135, %v610, %v681
    %v684 = vunpack.c.l.s4 1983009808
    %v685 = vunpack.c.0.s8 %v684
    %v686 = vperm.slane %v680, %v685
    %v688 = vunpack.c.l.s4 1983009808
    %v689 = vunpack.c.0.s8 %v688
    %v690 = vperm.slane %v682, %v689
    %v691 = vrot.slane %v614, 4
    %v692 = vsel %vm135, %v691, %v606
    %v693 = vrot.slane %v606, 4
    %v694 = vsel %vm135, %v614, %v693
    %v696 = vunpack.c.l.s4 1983009808
    %v697 = vunpack.c.0.s8 %v696
    %v698 = vperm.slane %v692, %v697
    %v700 = vunpack.c.l.s4 1983009808
    %v701 = vunpack.c.0.s8 %v700
    %v702 = vperm.slane %v694, %v701
    %v703 = vrot.slane %v698, 4
    %v704 = vsel %vm135, %v703, %v686
    %v705 = vrot.slane %v686, 4
    %v706 = vsel %vm135, %v698, %v705
    %v708 = vunpack.c.l.s4 1934713408
    %v709 = vunpack.c.0.s8 %v708
    %v710 = vperm.slane %v704, %v709
    %v712 = vunpack.c.l.s4 1934713408
    %v713 = vunpack.c.0.s8 %v712
    %v714 = vperm.slane %v706, %v713
    %v715 = vrot.slane %v702, 4
    %v716 = vsel %vm135, %v715, %v690
    %v717 = vrot.slane %v690, 4
    %v718 = vsel %vm135, %v702, %v717
    %v720 = vunpack.c.l.s4 1934713408
    %v721 = vunpack.c.0.s8 %v720
    %v722 = vperm.slane %v716, %v721
    %v724 = vunpack.c.l.s4 1934713408
    %v725 = vunpack.c.0.s8 %v724
    %v726 = vperm.slane %v718, %v725
    %v727 = vrot.slane %v710, 4
    %v728 = vsel %vm135, 0.0, %v727
    %v729 = vrot.slane %v714, 4
    %v730 = vsel %vm135, 0.0, %v729
    %v731 = vrot.slane %v722, 4
    %v732 = vsel %vm135, 0.0, %v731
    %v733 = vrot.slane %v726, 4
    %v734 = vsel %vm135, 0.0, %v733
    %v735 = vsel %vm135, %v673, %v654
    %v737 = vunpack.c.l.s4 1983009808
    %v738 = vunpack.c.0.s8 %v737
    %v739 = vperm.slane %v735, %v738
    %v740 = vrot.slane %v674, 4
    %v741 = vsel %vm135, %v740, %v672
    %v743 = vunpack.c.l.s4 1983009808
    %v744 = vunpack.c.0.s8 %v743
    %v745 = vperm.slane %v741, %v744
    %v746 = vsel %vm135, %v677, %v666
    %v748 = vunpack.c.l.s4 1983009808
    %v749 = vunpack.c.0.s8 %v748
    %v750 = vperm.slane %v746, %v749
    %v751 = vrot.slane %v678, 4
    %v752 = vsel %vm135, %v751, %v676
    %v754 = vunpack.c.l.s4 1983009808
    %v755 = vunpack.c.0.s8 %v754
    %v756 = vperm.slane %v752, %v755
    %v757 = vrot.slane %v745, 4
    %v758 = vsel %vm135, %v757, %v739
    %v759 = vrot.slane %v739, 4
    %v760 = vsel %vm135, %v745, %v759
    %v762 = vunpack.c.l.s4 1934713408
    %v763 = vunpack.c.0.s8 %v762
    %v764 = vperm.slane %v758, %v763
    %v766 = vunpack.c.l.s4 1934713408
    %v767 = vunpack.c.0.s8 %v766
    %v768 = vperm.slane %v760, %v767
    %v769 = vrot.slane %v756, 4
    %v770 = vsel %vm135, %v769, %v750
    %v771 = vrot.slane %v750, 4
    %v772 = vsel %vm135, %v756, %v771
    %v774 = vunpack.c.l.s4 1934713408
    %v775 = vunpack.c.0.s8 %v774
    %v776 = vperm.slane %v770, %v775
    %v778 = vunpack.c.l.s4 1934713408
    %v779 = vunpack.c.0.s8 %v778
    %v780 = vperm.slane %v772, %v779
    %v781 = vrot.slane %v776, 4
    %v782 = vsel %vm135, %v781, %v764
    %v783 = vrot.slane %v764, 4
    %v784 = vsel %vm135, %v776, %v783
    %v785 = vrot.slane %v780, 4
    %v786 = vsel %vm135, %v785, %v768
    %v787 = vrot.slane %v768, 4
    %v788 = vsel %vm135, %v780, %v787
    %v789 = vsel %vm135, %v729, %v710
    %v791 = vunpack.c.l.s4 1983009808
    %v792 = vunpack.c.0.s8 %v791
    %v793 = vperm.slane %v789, %v792
    %v794 = vrot.slane %v730, 4
    %v795 = vsel %vm135, %v794, %v728
    %v797 = vunpack.c.l.s4 1983009808
    %v798 = vunpack.c.0.s8 %v797
    %v799 = vperm.slane %v795, %v798
    %v800 = vsel %vm135, %v733, %v722
    %v802 = vunpack.c.l.s4 1983009808
    %v803 = vunpack.c.0.s8 %v802
    %v804 = vperm.slane %v800, %v803
    %v805 = vrot.slane %v734, 4
    %v806 = vsel %vm135, %v805, %v732
    %v808 = vunpack.c.l.s4 1983009808
    %v809 = vunpack.c.0.s8 %v808
    %v810 = vperm.slane %v806, %v809
    %v811 = vrot.slane %v799, 4
    %v812 = vsel %vm135, %v811, %v793
    %v813 = vrot.slane %v793, 4
    %v814 = vsel %vm135, %v799, %v813
    %v816 = vunpack.c.l.s4 1934713408
    %v817 = vunpack.c.0.s8 %v816
    %v818 = vperm.slane %v812, %v817
    %v820 = vunpack.c.l.s4 1934713408
    %v821 = vunpack.c.0.s8 %v820
    %v822 = vperm.slane %v814, %v821
    %v823 = vrot.slane %v810, 4
    %v824 = vsel %vm135, %v823, %v804
    %v825 = vrot.slane %v804, 4
    %v826 = vsel %vm135, %v810, %v825
    %v828 = vunpack.c.l.s4 1934713408
    %v829 = vunpack.c.0.s8 %v828
    %v830 = vperm.slane %v824, %v829
    %v832 = vunpack.c.l.s4 1934713408
    %v833 = vunpack.c.0.s8 %v832
    %v834 = vperm.slane %v826, %v833
    %v835 = vrot.slane %v830, 4
    %v836 = vsel %vm135, %v835, %v818
    %v837 = vrot.slane %v818, 4
    %v838 = vsel %vm135, %v830, %v837
    %v839 = vrot.slane %v834, 4
    %v840 = vsel %vm135, %v839, %v822
    %v841 = vrot.slane %v822, 4
    %v842 = vsel %vm135, %v834, %v841
    %v843 = vld [vmem:[#allocation5] sm:$0x3]
    %v844 = vmul.f32 %v843, -1e+30
    %v846 = vrot.slane %v844, 1
    %v847 = vperm.slane %v844, 0
    %v848 = vperm.slane %v846, 0
    %vm851 = vcmask 64512
    %v853 = vsel %vm851, %v294, 0
    %v856 = vsel %vm851, %v538, 0
    %858 = vmatpush.xpose.msra.mxu0 0.0
    %859 = vmatpush.xpose.msra.mxu0 0.0
    %860 = vmatpush.xpose.msra.mxu0 0.0
    %861 = vmatpush.xpose.msra.mxu0 0.0
    %862 = vmatpush.xpose.msra.mxu0 0.0
    %863 = vmatpush.xpose.msra.mxu0 0.0
    %864 = vmatpush.xpose.msra.mxu0 0.0
    %865 = vmatpush.xpose.msra.mxu0 0.0
    %866 = vmatpush.xpose.msra.mxu0 0.0
    %867 = vmatpush.xpose.msra.mxu0 0.0
    %868 = vmatpush.xpose.msra.mxu0 0.0
    %869 = vmatpush.xpose.msra.mxu0 0.0
    %870 = vmatpush.xpose.msra.mxu0 0.0
    %871 = vmatpush.xpose.msra.mxu0 0.0
    %872 = vmatpush.xpose.msra.mxu0 0.0
    %873 = vmatpush.xpose.msra.mxu0 %v856
    %874 = vmatmul.f32.gmra.mxu0 %v853
    %v875 = vpop.f32.mrf.mxu0
    %v876 = vadd.f32 %v847, %v875
    %877 = vdwg.mxu0
    %v879 = vsel %vm851, %v296, 0
    %v882 = vsel %vm851, %v540, 0
    %884 = vmatpush.xpose.msra.mxu0 0.0
    %885 = vmatpush.xpose.msra.mxu0 0.0
    %886 = vmatpush.xpose.msra.mxu0 0.0
    %887 = vmatpush.xpose.msra.mxu0 0.0
    %888 = vmatpush.xpose.msra.mxu0 0.0
    %889 = vmatpush.xpose.msra.mxu0 0.0
    %890 = vmatpush.xpose.msra.mxu0 0.0
    %891 = vmatpush.xpose.msra.mxu0 0.0
    %892 = vmatpush.xpose.msra.mxu0 0.0
    %893 = vmatpush.xpose.msra.mxu0 0.0
    %894 = vmatpush.xpose.msra.mxu0 0.0
    %895 = vmatpush.xpose.msra.mxu0 0.0
    %896 = vmatpush.xpose.msra.mxu0 0.0
    %897 = vmatpush.xpose.msra.mxu0 0.0
    %898 = vmatpush.xpose.msra.mxu0 0.0
    %899 = vmatpush.xpose.msra.mxu0 %v882
    %900 = vmatmul.f32.gmra.mxu0 %v879
    %v901 = vpop.f32.mrf.mxu0
    %v902 = vadd.f32 %v847, %v901
    %903 = vdwg.mxu0
    %v905 = vsel %vm851, %v298, 0
    %v908 = vsel %vm851, %v542, 0
    %910 = vmatpush.xpose.msra.mxu0 0.0
    %911 = vmatpush.xpose.msra.mxu0 0.0
    %912 = vmatpush.xpose.msra.mxu0 0.0
    %913 = vmatpush.xpose.msra.mxu0 0.0
    %914 = vmatpush.xpose.msra.mxu0 0.0
    %915 = vmatpush.xpose.msra.mxu0 0.0
    %916 = vmatpush.xpose.msra.mxu0 0.0
    %917 = vmatpush.xpose.msra.mxu0 0.0
    %918 = vmatpush.xpose.msra.mxu0 0.0
    %919 = vmatpush.xpose.msra.mxu0 0.0
    %920 = vmatpush.xpose.msra.mxu0 0.0
    %921 = vmatpush.xpose.msra.mxu0 0.0
    %922 = vmatpush.xpose.msra.mxu0 0.0
    %923 = vmatpush.xpose.msra.mxu0 0.0
    %924 = vmatpush.xpose.msra.mxu0 0.0
    %925 = vmatpush.xpose.msra.mxu0 %v908
    %926 = vmatmul.f32.gmra.mxu0 %v905
    %v927 = vpop.f32.mrf.mxu0
    %v928 = vadd.f32 %v847, %v927
    %929 = vdwg.mxu0
    %v931 = vsel %vm851, %v300, 0
    %v934 = vsel %vm851, %v544, 0
    %936 = vmatpush.xpose.msra.mxu0 0.0
    %937 = vmatpush.xpose.msra.mxu0 0.0
    %938 = vmatpush.xpose.msra.mxu0 0.0
    %939 = vmatpush.xpose.msra.mxu0 0.0
    %940 = vmatpush.xpose.msra.mxu0 0.0
    %941 = vmatpush.xpose.msra.mxu0 0.0
    %942 = vmatpush.xpose.msra.mxu0 0.0
    %943 = vmatpush.xpose.msra.mxu0 0.0
    %944 = vmatpush.xpose.msra.mxu0 0.0
    %945 = vmatpush.xpose.msra.mxu0 0.0
    %946 = vmatpush.xpose.msra.mxu0 0.0
    %947 = vmatpush.xpose.msra.mxu0 0.0
    %948 = vmatpush.xpose.msra.mxu0 0.0
    %949 = vmatpush.xpose.msra.mxu0 0.0
    %950 = vmatpush.xpose.msra.mxu0 0.0
    %951 = vmatpush.xpose.msra.mxu0 %v934
    %952 = vmatmul.f32.gmra.mxu0 %v931
    %v953 = vpop.f32.mrf.mxu0
    %v954 = vadd.f32 %v847, %v953
    %955 = vdwg.mxu0
    %v957 = vsel %vm851, %v348, 0
    %v960 = vsel %vm851, %v592, 0
    %962 = vmatpush.xpose.msra.mxu0 0.0
    %963 = vmatpush.xpose.msra.mxu0 0.0
    %964 = vmatpush.xpose.msra.mxu0 0.0
    %965 = vmatpush.xpose.msra.mxu0 0.0
    %966 = vmatpush.xpose.msra.mxu0 0.0
    %967 = vmatpush.xpose.msra.mxu0 0.0
    %968 = vmatpush.xpose.msra.mxu0 0.0
    %969 = vmatpush.xpose.msra.mxu0 0.0
    %970 = vmatpush.xpose.msra.mxu0 0.0
    %971 = vmatpush.xpose.msra.mxu0 0.0
    %972 = vmatpush.xpose.msra.mxu0 0.0
    %973 = vmatpush.xpose.msra.mxu0 0.0
    %974 = vmatpush.xpose.msra.mxu0 0.0
    %975 = vmatpush.xpose.msra.mxu0 0.0
    %976 = vmatpush.xpose.msra.mxu0 0.0
    %977 = vmatpush.xpose.msra.mxu0 %v960
    %978 = vmatmul.f32.gmra.mxu0 %v957
    %v979 = vpop.f32.mrf.mxu0
    %v980 = vadd.f32 %v848, %v979
    %981 = vdwg.mxu0
    %v983 = vsel %vm851, %v350, 0
    %v986 = vsel %vm851, %v594, 0
    %988 = vmatpush.xpose.msra.mxu0 0.0
    %989 = vmatpush.xpose.msra.mxu0 0.0
    %990 = vmatpush.xpose.msra.mxu0 0.0
    %991 = vmatpush.xpose.msra.mxu0 0.0
    %992 = vmatpush.xpose.msra.mxu0 0.0
    %993 = vmatpush.xpose.msra.mxu0 0.0
    %994 = vmatpush.xpose.msra.mxu0 0.0
    %995 = vmatpush.xpose.msra.mxu0 0.0
    %996 = vmatpush.xpose.msra.mxu0 0.0
    %997 = vmatpush.xpose.msra.mxu0 0.0
    %998 = vmatpush.xpose.msra.mxu0 0.0
    %999 = vmatpush.xpose.msra.mxu0 0.0
    %1000 = vmatpush.xpose.msra.mxu0 0.0
    %1001 = vmatpush.xpose.msra.mxu0 0.0
    %1002 = vmatpush.xpose.msra.mxu0 0.0
    %1003 = vmatpush.xpose.msra.mxu0 %v986
    %1004 = vmatmul.f32.gmra.mxu0 %v983
    %v1005 = vpop.f32.mrf.mxu0
    %v1006 = vadd.f32 %v848, %v1005
    %1007 = vdwg.mxu0
    %v1009 = vsel %vm851, %v352, 0
    %v1012 = vsel %vm851, %v596, 0
    %1014 = vmatpush.xpose.msra.mxu0 0.0
    %1015 = vmatpush.xpose.msra.mxu0 0.0
    %1016 = vmatpush.xpose.msra.mxu0 0.0
    %1017 = vmatpush.xpose.msra.mxu0 0.0
    %1018 = vmatpush.xpose.msra.mxu0 0.0
    %1019 = vmatpush.xpose.msra.mxu0 0.0
    %1020 = vmatpush.xpose.msra.mxu0 0.0
    %1021 = vmatpush.xpose.msra.mxu0 0.0
    %1022 = vmatpush.xpose.msra.mxu0 0.0
    %1023 = vmatpush.xpose.msra.mxu0 0.0
    %1024 = vmatpush.xpose.msra.mxu0 0.0
    %1025 = vmatpush.xpose.msra.mxu0 0.0
    %1026 = vmatpush.xpose.msra.mxu0 0.0
    %1027 = vmatpush.xpose.msra.mxu0 0.0
    %1028 = vmatpush.xpose.msra.mxu0 0.0
    %1029 = vmatpush.xpose.msra.mxu0 %v1012
    %1030 = vmatmul.f32.gmra.mxu0 %v1009
    %v1031 = vpop.f32.mrf.mxu0
    %v1032 = vadd.f32 %v848, %v1031
    %1033 = vdwg.mxu0
    %v1035 = vsel %vm851, %v354, 0
    %v1038 = vsel %vm851, %v598, 0
    %1040 = vmatpush.xpose.msra.mxu0 0.0
    %1041 = vmatpush.xpose.msra.mxu0 0.0
    %1042 = vmatpush.xpose.msra.mxu0 0.0
    %1043 = vmatpush.xpose.msra.mxu0 0.0
    %1044 = vmatpush.xpose.msra.mxu0 0.0
    %1045 = vmatpush.xpose.msra.mxu0 0.0
    %1046 = vmatpush.xpose.msra.mxu0 0.0
    %1047 = vmatpush.xpose.msra.mxu0 0.0
    %1048 = vmatpush.xpose.msra.mxu0 0.0
    %1049 = vmatpush.xpose.msra.mxu0 0.0
    %1050 = vmatpush.xpose.msra.mxu0 0.0
    %1051 = vmatpush.xpose.msra.mxu0 0.0
    %1052 = vmatpush.xpose.msra.mxu0 0.0
    %1053 = vmatpush.xpose.msra.mxu0 0.0
    %1054 = vmatpush.xpose.msra.mxu0 0.0
    %1055 = vmatpush.xpose.msra.mxu0 %v1038
    %1056 = vmatmul.f32.gmra.mxu0 %v1035
    %v1057 = vpop.f32.mrf.mxu0
    %v1058 = vadd.f32 %v848, %v1057
    %1059 = vdwg.mxu0
    %v1060 = vsel %vm851, %v876, -inf
    %1061 = vmax.xlane.f32.xlu0 %v1060
    %v1062 = vpop.xlane.xlu0 %1061
    %v1063 = vsel %vm851, %v902, -inf
    %1064 = vmax.xlane.f32.xlu0 %v1063
    %v1065 = vpop.xlane.xlu0 %1064
    %v1066 = vsel %vm851, %v928, -inf
    %1067 = vmax.xlane.f32.xlu0 %v1066
    %v1068 = vpop.xlane.xlu0 %1067
    %v1069 = vsel %vm851, %v954, -inf
    %1070 = vmax.xlane.f32.xlu0 %v1069
    %v1071 = vpop.xlane.xlu0 %1070
    %v1072 = vsel %vm851, %v980, -inf
    %1073 = vmax.xlane.f32.xlu0 %v1072
    %v1074 = vpop.xlane.xlu0 %1073
    %v1075 = vsel %vm851, %v1006, -inf
    %1076 = vmax.xlane.f32.xlu0 %v1075
    %v1077 = vpop.xlane.xlu0 %1076
    %v1078 = vsel %vm851, %v1032, -inf
    %1079 = vmax.xlane.f32.xlu0 %v1078
    %v1080 = vpop.xlane.xlu0 %1079
    %v1081 = vsel %vm851, %v1058, -inf
    %1082 = vmax.xlane.f32.xlu0 %v1081
    %v1083 = vpop.xlane.xlu0 %1082
    %v1084 = vsub.f32 %v876, %v1062
    %v1085 = vsub.f32 %v902, %v1065
    %v1086 = vsub.f32 %v928, %v1068
    %v1087 = vsub.f32 %v954, %v1071
    %v1088 = vsub.f32 %v980, %v1074
    %v1089 = vsub.f32 %v1006, %v1077
    %v1090 = vsub.f32 %v1032, %v1080
    %v1091 = vsub.f32 %v1058, %v1083
    %v1092 = vmul.f32 %v1084, 1.442695
    %v1093 = vpow.pop %v1092
    %v1094 = vmul.f32 %v1085, 1.442695
    %v1095 = vpow.pop %v1094
    %v1096 = vmul.f32 %v1086, 1.442695
    %v1097 = vpow.pop %v1096
    %v1098 = vmul.f32 %v1087, 1.442695
    %v1099 = vpow.pop %v1098
    %v1100 = vmul.f32 %v1088, 1.442695
    %v1101 = vpow.pop %v1100
    %v1102 = vmul.f32 %v1089, 1.442695
    %v1103 = vpow.pop %v1102
    %v1104 = vmul.f32 %v1090, 1.442695
    %v1105 = vpow.pop %v1104
    %v1106 = vmul.f32 %v1091, 1.442695
    %v1107 = vpow.pop %v1106
    %v1108 = vsel %vm851, %v1093, 0.0
    %1109 = vadd.xlane.f32.xlu0 %v1108
    %v1110 = vpop.xlane.xlu0 %1109
    %v1111 = vsel %vm851, %v1095, 0.0
    %1112 = vadd.xlane.f32.xlu0 %v1111
    %v1113 = vpop.xlane.xlu0 %1112
    %v1114 = vsel %vm851, %v1097, 0.0
    %1115 = vadd.xlane.f32.xlu0 %v1114
    %v1116 = vpop.xlane.xlu0 %1115
    %v1117 = vsel %vm851, %v1099, 0.0
    %1118 = vadd.xlane.f32.xlu0 %v1117
    %v1119 = vpop.xlane.xlu0 %1118
    %v1120 = vsel %vm851, %v1101, 0.0
    %1121 = vadd.xlane.f32.xlu0 %v1120
    %v1122 = vpop.xlane.xlu0 %1121
    %v1123 = vsel %vm851, %v1103, 0.0
    %1124 = vadd.xlane.f32.xlu0 %v1123
    %v1125 = vpop.xlane.xlu0 %1124
    %v1126 = vsel %vm851, %v1105, 0.0
    %1127 = vadd.xlane.f32.xlu0 %v1126
    %v1128 = vpop.xlane.xlu0 %1127
    %v1129 = vsel %vm851, %v1107, 0.0
    %1130 = vadd.xlane.f32.xlu0 %v1129
    %v1131 = vpop.xlane.xlu0 %1130
    %v1132 = vrcp.pop %v1110
    %v1133 = vrcp.pop %v1113
    %v1134 = vrcp.pop %v1116
    %v1135 = vrcp.pop %v1119
    %v1136 = vrcp.pop %v1122
    %v1137 = vrcp.pop %v1125
    %v1138 = vrcp.pop %v1128
    %v1139 = vrcp.pop %v1131
    %v1140 = vmul.f32 %v1110, %v1132
    %v1141 = vmul.f32 %v1113, %v1133
    %v1142 = vmul.f32 %v1116, %v1134
    %v1143 = vmul.f32 %v1119, %v1135
    %v1144 = vmul.f32 %v1122, %v1136
    %v1145 = vmul.f32 %v1125, %v1137
    %v1146 = vmul.f32 %v1128, %v1138
    %v1147 = vmul.f32 %v1131, %v1139
    %v1148 = vsub.f32 2.0, %v1140
    %v1149 = vsub.f32 2.0, %v1141
    %v1150 = vsub.f32 2.0, %v1142
    %v1151 = vsub.f32 2.0, %v1143
    %v1152 = vsub.f32 2.0, %v1144
    %v1153 = vsub.f32 2.0, %v1145
    %v1154 = vsub.f32 2.0, %v1146
    %v1155 = vsub.f32 2.0, %v1147
    %v1156 = vmul.f32 %v1132, %v1148
    %v1157 = vmul.f32 %v1133, %v1149
    %v1158 = vmul.f32 %v1134, %v1150
    %v1159 = vmul.f32 %v1135, %v1151
    %v1160 = vmul.f32 %v1136, %v1152
    %v1161 = vmul.f32 %v1137, %v1153
    %v1162 = vmul.f32 %v1138, %v1154
    %v1163 = vmul.f32 %v1139, %v1155
    %v1164 = vmul.f32 %v1093, %v1156
    %v1165 = vmul.f32 %v1095, %v1157
    %v1166 = vmul.f32 %v1097, %v1158
    %v1167 = vmul.f32 %v1099, %v1159
    %v1168 = vmul.f32 %v1101, %v1160
    %v1169 = vmul.f32 %v1103, %v1161
    %v1170 = vmul.f32 %v1105, %v1162
    %v1171 = vmul.f32 %v1107, %v1163
    %v1173 = vsel %vm851, %v1164, 0
    %1175 = vmatpush.msra.mxu0 0.0
    %1176 = vmatpush.msra.mxu0 0.0
    %1177 = vmatpush.msra.mxu0 0.0
    %1178 = vmatpush.msra.mxu0 0.0
    %1179 = vmatpush.msra.mxu0 0.0
    %1180 = vmatpush.msra.mxu0 0.0
    %1181 = vmatpush.msra.mxu0 0.0
    %1182 = vmatpush.msra.mxu0 0.0
    %1183 = vmatpush.msra.mxu0 0.0
    %1184 = vmatpush.msra.mxu0 0.0
    %1185 = vmatpush.msra.mxu0 0.0
    %1186 = vmatpush.msra.mxu0 0.0
    %1187 = vmatpush.msra.mxu0 0.0
    %1188 = vmatpush.msra.mxu0 0.0
    %1189 = vmatpush.msra.mxu0 0.0
    %1190 = vmatpush.msra.mxu0 %v782
    %1191 = vmatmul.f32.gmra.mxu0 %v1173
    %v1192 = vpop.f32.mrf.mxu0
    %v1193 = vadd.f32 0.0, %v1192
    %1194 = vdwg.mxu0
    %v1196 = vsel %vm851, %v1165, 0
    %1198 = vmatpush.msra.mxu0 0.0
    %1199 = vmatpush.msra.mxu0 0.0
    %1200 = vmatpush.msra.mxu0 0.0
    %1201 = vmatpush.msra.mxu0 0.0
    %1202 = vmatpush.msra.mxu0 0.0
    %1203 = vmatpush.msra.mxu0 0.0
    %1204 = vmatpush.msra.mxu0 0.0
    %1205 = vmatpush.msra.mxu0 0.0
    %1206 = vmatpush.msra.mxu0 0.0
    %1207 = vmatpush.msra.mxu0 0.0
    %1208 = vmatpush.msra.mxu0 0.0
    %1209 = vmatpush.msra.mxu0 0.0
    %1210 = vmatpush.msra.mxu0 0.0
    %1211 = vmatpush.msra.mxu0 0.0
    %1212 = vmatpush.msra.mxu0 0.0
    %1213 = vmatpush.msra.mxu0 %v784
    %1214 = vmatmul.f32.gmra.mxu0 %v1196
    %v1215 = vpop.f32.mrf.mxu0
    %v1216 = vadd.f32 0.0, %v1215
    %1217 = vdwg.mxu0
    %v1219 = vsel %vm851, %v1166, 0
    %1221 = vmatpush.msra.mxu0 0.0
    %1222 = vmatpush.msra.mxu0 0.0
    %1223 = vmatpush.msra.mxu0 0.0
    %1224 = vmatpush.msra.mxu0 0.0
    %1225 = vmatpush.msra.mxu0 0.0
    %1226 = vmatpush.msra.mxu0 0.0
    %1227 = vmatpush.msra.mxu0 0.0
    %1228 = vmatpush.msra.mxu0 0.0
    %1229 = vmatpush.msra.mxu0 0.0
    %1230 = vmatpush.msra.mxu0 0.0
    %1231 = vmatpush.msra.mxu0 0.0
    %1232 = vmatpush.msra.mxu0 0.0
    %1233 = vmatpush.msra.mxu0 0.0
    %1234 = vmatpush.msra.mxu0 0.0
    %1235 = vmatpush.msra.mxu0 0.0
    %1236 = vmatpush.msra.mxu0 %v786
    %1237 = vmatmul.f32.gmra.mxu0 %v1219
    %v1238 = vpop.f32.mrf.mxu0
    %v1239 = vadd.f32 0.0, %v1238
    %1240 = vdwg.mxu0
    %v1242 = vsel %vm851, %v1167, 0
    %1244 = vmatpush.msra.mxu0 0.0
    %1245 = vmatpush.msra.mxu0 0.0
    %1246 = vmatpush.msra.mxu0 0.0
    %1247 = vmatpush.msra.mxu0 0.0
    %1248 = vmatpush.msra.mxu0 0.0
    %1249 = vmatpush.msra.mxu0 0.0
    %1250 = vmatpush.msra.mxu0 0.0
    %1251 = vmatpush.msra.mxu0 0.0
    %1252 = vmatpush.msra.mxu0 0.0
    %1253 = vmatpush.msra.mxu0 0.0
    %1254 = vmatpush.msra.mxu0 0.0
    %1255 = vmatpush.msra.mxu0 0.0
    %1256 = vmatpush.msra.mxu0 0.0
    %1257 = vmatpush.msra.mxu0 0.0
    %1258 = vmatpush.msra.mxu0 0.0
    %1259 = vmatpush.msra.mxu0 %v788
    %1260 = vmatmul.f32.gmra.mxu0 %v1242
    %v1261 = vpop.f32.mrf.mxu0
    %v1262 = vadd.f32 0.0, %v1261
    %1263 = vdwg.mxu0
    %v1265 = vsel %vm851, %v1168, 0
    %1267 = vmatpush.msra.mxu0 0.0
    %1268 = vmatpush.msra.mxu0 0.0
    %1269 = vmatpush.msra.mxu0 0.0
    %1270 = vmatpush.msra.mxu0 0.0
    %1271 = vmatpush.msra.mxu0 0.0
    %1272 = vmatpush.msra.mxu0 0.0
    %1273 = vmatpush.msra.mxu0 0.0
    %1274 = vmatpush.msra.mxu0 0.0
    %1275 = vmatpush.msra.mxu0 0.0
    %1276 = vmatpush.msra.mxu0 0.0
    %1277 = vmatpush.msra.mxu0 0.0
    %1278 = vmatpush.msra.mxu0 0.0
    %1279 = vmatpush.msra.mxu0 0.0
    %1280 = vmatpush.msra.mxu0 0.0
    %1281 = vmatpush.msra.mxu0 0.0
    %1282 = vmatpush.msra.mxu0 %v836
    %1283 = vmatmul.f32.gmra.mxu0 %v1265
    %v1284 = vpop.f32.mrf.mxu0
    %v1285 = vadd.f32 0.0, %v1284
    %1286 = vdwg.mxu0
    %v1288 = vsel %vm851, %v1169, 0
    %1290 = vmatpush.msra.mxu0 0.0
    %1291 = vmatpush.msra.mxu0 0.0
    %1292 = vmatpush.msra.mxu0 0.0
    %1293 = vmatpush.msra.mxu0 0.0
    %1294 = vmatpush.msra.mxu0 0.0
    %1295 = vmatpush.msra.mxu0 0.0
    %1296 = vmatpush.msra.mxu0 0.0
    %1297 = vmatpush.msra.mxu0 0.0
    %1298 = vmatpush.msra.mxu0 0.0
    %1299 = vmatpush.msra.mxu0 0.0
    %1300 = vmatpush.msra.mxu0 0.0
    %1301 = vmatpush.msra.mxu0 0.0
    %1302 = vmatpush.msra.mxu0 0.0
    %1303 = vmatpush.msra.mxu0 0.0
    %1304 = vmatpush.msra.mxu0 0.0
    %1305 = vmatpush.msra.mxu0 %v838
    %1306 = vmatmul.f32.gmra.mxu0 %v1288
    %v1307 = vpop.f32.mrf.mxu0
    %v1308 = vadd.f32 0.0, %v1307
    %1309 = vdwg.mxu0
    %v1311 = vsel %vm851, %v1170, 0
    %1313 = vmatpush.msra.mxu0 0.0
    %1314 = vmatpush.msra.mxu0 0.0
    %1315 = vmatpush.msra.mxu0 0.0
    %1316 = vmatpush.msra.mxu0 0.0
    %1317 = vmatpush.msra.mxu0 0.0
    %1318 = vmatpush.msra.mxu0 0.0
    %1319 = vmatpush.msra.mxu0 0.0
    %1320 = vmatpush.msra.mxu0 0.0
    %1321 = vmatpush.msra.mxu0 0.0
    %1322 = vmatpush.msra.mxu0 0.0
    %1323 = vmatpush.msra.mxu0 0.0
    %1324 = vmatpush.msra.mxu0 0.0
    %1325 = vmatpush.msra.mxu0 0.0
    %1326 = vmatpush.msra.mxu0 0.0
    %1327 = vmatpush.msra.mxu0 0.0
    %1328 = vmatpush.msra.mxu0 %v840
    %1329 = vmatmul.f32.gmra.mxu0 %v1311
    %v1330 = vpop.f32.mrf.mxu0
    %v1331 = vadd.f32 0.0, %v1330
    %1332 = vdwg.mxu0
    %v1334 = vsel %vm851, %v1171, 0
    %1336 = vmatpush.msra.mxu0 0.0
    %1337 = vmatpush.msra.mxu0 0.0
    %1338 = vmatpush.msra.mxu0 0.0
    %1339 = vmatpush.msra.mxu0 0.0
    %1340 = vmatpush.msra.mxu0 0.0
    %1341 = vmatpush.msra.mxu0 0.0
    %1342 = vmatpush.msra.mxu0 0.0
    %1343 = vmatpush.msra.mxu0 0.0
    %1344 = vmatpush.msra.mxu0 0.0
    %1345 = vmatpush.msra.mxu0 0.0
    %1346 = vmatpush.msra.mxu0 0.0
    %1347 = vmatpush.msra.mxu0 0.0
    %1348 = vmatpush.msra.mxu0 0.0
    %1349 = vmatpush.msra.mxu0 0.0
    %1350 = vmatpush.msra.mxu0 0.0
    %1351 = vmatpush.msra.mxu0 %v842
    %1352 = vmatmul.f32.gmra.mxu0 %v1334
    %v1353 = vpop.f32.mrf.mxu0
    %v1354 = vadd.f32 0.0, %v1353
    %1355 = vdwg.mxu0
    %v1356 = vrot.slane %v1239, 4
    %v1357 = vsel %vm135, %v1356, %v1193
    %v1358 = vrot.slane %v1193, 4
    %v1359 = vsel %vm135, %v1239, %v1358
    %v1361 = vunpack.c.l.s4 1983009808
    %v1362 = vunpack.c.0.s8 %v1361
    %v1363 = vperm.slane %v1357, %v1362
    %v1365 = vunpack.c.l.s4 1983009808
    %v1366 = vunpack.c.0.s8 %v1365
    %v1367 = vperm.slane %v1359, %v1366
    %v1368 = vrot.slane %v1262, 4
    %v1369 = vsel %vm135, %v1368, %v1216
    %v1370 = vrot.slane %v1216, 4
    %v1371 = vsel %vm135, %v1262, %v1370
    %v1373 = vunpack.c.l.s4 1983009808
    %v1374 = vunpack.c.0.s8 %v1373
    %v1375 = vperm.slane %v1369, %v1374
    %v1377 = vunpack.c.l.s4 1983009808
    %v1378 = vunpack.c.0.s8 %v1377
    %v1379 = vperm.slane %v1371, %v1378
    %v1380 = vrot.slane %v1375, 4
    %v1381 = vsel %vm135, %v1380, %v1363
    %v1382 = vrot.slane %v1363, 4
    %v1383 = vsel %vm135, %v1375, %v1382
    %v1385 = vunpack.c.l.s4 1934713408
    %v1386 = vunpack.c.0.s8 %v1385
    %v1387 = vperm.slane %v1381, %v1386
    %v1389 = vunpack.c.l.s4 1934713408
    %v1390 = vunpack.c.0.s8 %v1389
    %v1391 = vperm.slane %v1383, %v1390
    %v1392 = vrot.slane %v1379, 4
    %v1393 = vsel %vm135, %v1392, %v1367
    %v1394 = vrot.slane %v1367, 4
    %v1395 = vsel %vm135, %v1379, %v1394
    %v1397 = vunpack.c.l.s4 1934713408
    %v1398 = vunpack.c.0.s8 %v1397
    %v1399 = vperm.slane %v1393, %v1398
    %v1401 = vunpack.c.l.s4 1934713408
    %v1402 = vunpack.c.0.s8 %v1401
    %v1403 = vperm.slane %v1395, %v1402
    %v1404 = vrot.slane %v1387, 4
    %v1405 = vsel %vm135, 0.0, %v1404
    %v1406 = vrot.slane %v1391, 4
    %v1407 = vsel %vm135, 0.0, %v1406
    %v1408 = vrot.slane %v1399, 4
    %v1409 = vsel %vm135, 0.0, %v1408
    %v1410 = vrot.slane %v1403, 4
    %v1411 = vsel %vm135, 0.0, %v1410
    %v1412 = vrot.slane %v1331, 4
    %v1413 = vsel %vm135, %v1412, %v1285
    %v1414 = vrot.slane %v1285, 4
    %v1415 = vsel %vm135, %v1331, %v1414
    %v1417 = vunpack.c.l.s4 1983009808
    %v1418 = vunpack.c.0.s8 %v1417
    %v1419 = vperm.slane %v1413, %v1418
    %v1421 = vunpack.c.l.s4 1983009808
    %v1422 = vunpack.c.0.s8 %v1421
    %v1423 = vperm.slane %v1415, %v1422
    %v1424 = vrot.slane %v1354, 4
    %v1425 = vsel %vm135, %v1424, %v1308
    %v1426 = vrot.slane %v1308, 4
    %v1427 = vsel %vm135, %v1354, %v1426
    %v1429 = vunpack.c.l.s4 1983009808
    %v1430 = vunpack.c.0.s8 %v1429
    %v1431 = vperm.slane %v1425, %v1430
    %v1433 = vunpack.c.l.s4 1983009808
    %v1434 = vunpack.c.0.s8 %v1433
    %v1435 = vperm.slane %v1427, %v1434
    %v1436 = vrot.slane %v1431, 4
    %v1437 = vsel %vm135, %v1436, %v1419
    %v1438 = vrot.slane %v1419, 4
    %v1439 = vsel %vm135, %v1431, %v1438
    %v1441 = vunpack.c.l.s4 1934713408
    %v1442 = vunpack.c.0.s8 %v1441
    %v1443 = vperm.slane %v1437, %v1442
    %v1445 = vunpack.c.l.s4 1934713408
    %v1446 = vunpack.c.0.s8 %v1445
    %v1447 = vperm.slane %v1439, %v1446
    %v1448 = vrot.slane %v1435, 4
    %v1449 = vsel %vm135, %v1448, %v1423
    %v1450 = vrot.slane %v1423, 4
    %v1451 = vsel %vm135, %v1435, %v1450
    %v1453 = vunpack.c.l.s4 1934713408
    %v1454 = vunpack.c.0.s8 %v1453
    %v1455 = vperm.slane %v1449, %v1454
    %v1457 = vunpack.c.l.s4 1934713408
    %v1458 = vunpack.c.0.s8 %v1457
    %v1459 = vperm.slane %v1451, %v1458
    %v1460 = vrot.slane %v1443, 4
    %v1461 = vsel %vm135, 0.0, %v1460
    %v1462 = vrot.slane %v1447, 4
    %v1463 = vsel %vm135, 0.0, %v1462
    %v1464 = vrot.slane %v1455, 4
    %v1465 = vsel %vm135, 0.0, %v1464
    %v1466 = vrot.slane %v1459, 4
    %v1467 = vsel %vm135, 0.0, %v1466
    %v1468 = vsel %vm135, %v1406, %v1387
    %v1470 = vunpack.c.l.s4 1983009808
    %v1471 = vunpack.c.0.s8 %v1470
    %v1472 = vperm.slane %v1468, %v1471
    %v1473 = vrot.slane %v1407, 4
    %v1474 = vsel %vm135, %v1473, %v1405
    %v1476 = vunpack.c.l.s4 1983009808
    %v1477 = vunpack.c.0.s8 %v1476
    %v1478 = vperm.slane %v1474, %v1477
    %v1479 = vsel %vm135, %v1410, %v1399
    %v1481 = vunpack.c.l.s4 1983009808
    %v1482 = vunpack.c.0.s8 %v1481
    %v1483 = vperm.slane %v1479, %v1482
    %v1484 = vrot.slane %v1411, 4
    %v1485 = vsel %vm135, %v1484, %v1409
    %v1487 = vunpack.c.l.s4 1983009808
    %v1488 = vunpack.c.0.s8 %v1487
    %v1489 = vperm.slane %v1485, %v1488
    %v1490 = vrot.slane %v1478, 4
    %v1491 = vsel %vm135, %v1490, %v1472
    %v1492 = vrot.slane %v1472, 4
    %v1493 = vsel %vm135, %v1478, %v1492
    %v1495 = vunpack.c.l.s4 1934713408
    %v1496 = vunpack.c.0.s8 %v1495
    %v1497 = vperm.slane %v1491, %v1496
    %v1499 = vunpack.c.l.s4 1934713408
    %v1500 = vunpack.c.0.s8 %v1499
    %v1501 = vperm.slane %v1493, %v1500
    %v1502 = vrot.slane %v1489, 4
    %v1503 = vsel %vm135, %v1502, %v1483
    %v1504 = vrot.slane %v1483, 4
    %v1505 = vsel %vm135, %v1489, %v1504
    %v1507 = vunpack.c.l.s4 1934713408
    %v1508 = vunpack.c.0.s8 %v1507
    %v1509 = vperm.slane %v1503, %v1508
    %v1511 = vunpack.c.l.s4 1934713408
    %v1512 = vunpack.c.0.s8 %v1511
    %v1513 = vperm.slane %v1505, %v1512
    %v1514 = vrot.slane %v1509, 4
    %v1515 = vsel %vm135, %v1514, %v1497
    %v1516 = vrot.slane %v1497, 4
    %v1517 = vsel %vm135, %v1509, %v1516
    %v1518 = vrot.slane %v1513, 4
    %v1519 = vsel %vm135, %v1518, %v1501
    %v1520 = vrot.slane %v1501, 4
    %v1521 = vsel %vm135, %v1513, %v1520
    %v1522 = vsel %vm135, %v1462, %v1443
    %v1524 = vunpack.c.l.s4 1983009808
    %v1525 = vunpack.c.0.s8 %v1524
    %v1526 = vperm.slane %v1522, %v1525
    %v1527 = vrot.slane %v1463, 4
    %v1528 = vsel %vm135, %v1527, %v1461
    %v1530 = vunpack.c.l.s4 1983009808
    %v1531 = vunpack.c.0.s8 %v1530
    %v1532 = vperm.slane %v1528, %v1531
    %v1533 = vsel %vm135, %v1466, %v1455
    %v1535 = vunpack.c.l.s4 1983009808
    %v1536 = vunpack.c.0.s8 %v1535
    %v1537 = vperm.slane %v1533, %v1536
    %v1538 = vrot.slane %v1467, 4
    %v1539 = vsel %vm135, %v1538, %v1465
    %v1541 = vunpack.c.l.s4 1983009808
    %v1542 = vunpack.c.0.s8 %v1541
    %v1543 = vperm.slane %v1539, %v1542
    %v1544 = vrot.slane %v1532, 4
    %v1545 = vsel %vm135, %v1544, %v1526
    %v1546 = vrot.slane %v1526, 4
    %v1547 = vsel %vm135, %v1532, %v1546
    %v1549 = vunpack.c.l.s4 1934713408
    %v1550 = vunpack.c.0.s8 %v1549
    %v1551 = vperm.slane %v1545, %v1550
    %v1553 = vunpack.c.l.s4 1934713408
    %v1554 = vunpack.c.0.s8 %v1553
    %v1555 = vperm.slane %v1547, %v1554
    %v1556 = vrot.slane %v1543, 4
    %v1557 = vsel %vm135, %v1556, %v1537
    %v1558 = vrot.slane %v1537, 4
    %v1559 = vsel %vm135, %v1543, %v1558
    %v1561 = vunpack.c.l.s4 1934713408
    %v1562 = vunpack.c.0.s8 %v1561
    %v1563 = vperm.slane %v1557, %v1562
    %v1565 = vunpack.c.l.s4 1934713408
    %v1566 = vunpack.c.0.s8 %v1565
    %v1567 = vperm.slane %v1559, %v1566
    %v1568 = vrot.slane %v1563, 4
    %v1569 = vsel %vm135, %v1568, %v1551
    %v1570 = vrot.slane %v1551, 4
    %v1571 = vsel %vm135, %v1563, %v1570
    %v1572 = vrot.slane %v1567, 4
    %v1573 = vsel %vm135, %v1572, %v1555
    %v1574 = vrot.slane %v1555, 4
    %v1575 = vsel %vm135, %v1567, %v1574
    %1578 = vrot.lane.b32.xlu0 %v1517, 8
    %v1579 = vpop.permute.xlu0 %1578
    %1580 = vrot.lane.b32.xlu0 %v1571, 8
    %v1581 = vpop.permute.xlu0 %1580
    %1586 = vrot.lane.b32.xlu0 %v1519, 16
    %v1587 = vpop.permute.xlu0 %1586
    %1588 = vrot.lane.b32.xlu0 %v1573, 16
    %v1589 = vpop.permute.xlu0 %1588
    %1594 = vrot.lane.b32.xlu0 %v1521, 24
    %v1595 = vpop.permute.xlu0 %1594
    %1596 = vrot.lane.b32.xlu0 %v1575, 24
    %v1597 = vpop.permute.xlu0 %1596
    %v1600 = vsel %vm851, %v1515, %v1579
    %v1601 = vsel %vm851, %v1569, %v1581
    %vm1602 = vcmask 130048
    %v1603 = vsel %vm1602, %v1600, %v1587
    %v1604 = vsel %vm1602, %v1601, %v1589
    %vm1605 = vcmask 195584
    %v1606 = vsel %vm1605, %v1603, %v1595
    %v1607 = vsel %vm1605, %v1604, %v1597
    %v1608 = vperm.slane %v82, 2
    %v1610 = vsel %vm84, %v1606, 0
    %v1613 = vsel %vm84, %v1607, 0
    %1615 = vmatpush.msra.mxu0 0.0
    %1616 = vmatpush.msra.mxu0 0.0
    %1617 = vmatpush.msra.mxu0 0.0
    %1618 = vmatpush.msra.mxu0 0.0
    %1619 = vmatpush.msra.mxu0 0.0
    %1620 = vmatpush.msra.mxu0 0.0
    %1621 = vmatpush.msra.mxu0 0.0
    %1622 = vmatpush.msra.mxu0 0.0
    %1623 = vmatpush.msra.mxu0 0.0
    %1624 = vmatpush.msra.mxu0 0.0
    %1625 = vmatpush.msra.mxu0 0.0
    %1626 = vmatpush.msra.mxu0 0.0
    %1627 = vmatpush.msra.mxu0 %v69
    %1628 = vmatpush.msra.mxu0 %v68
    %1629 = vmatpush.msra.mxu0 %v67
    %1630 = vmatpush.msra.mxu0 %v66
    %1631 = vmatmul.f32.gmra.mxu0 %v1610
    %v1632 = vpop.f32.mrf.mxu0
    %v1633 = vadd.f32 %v1608, %v1632
    %1634 = vmatmul.f32.gmra.mxu0 %v1613
    %v1635 = vpop.f32.mrf.mxu0
    %v1636 = vadd.f32 %v1608, %v1635
    %1637 = vdwg.mxu0
    %v1638 = vadd.f32 %v1633, %v60
    %v1639 = vadd.f32 %v1636, %v61
    %v1640 = vsel %vm84, %v1638, 0.0
    %1641 = vadd.xlane.f32.xlu0 %v1640
    %v1642 = vpop.xlane.xlu0 %1641
    %v1643 = vsel %vm84, %v1639, 0.0
    %1644 = vadd.xlane.f32.xlu0 %v1643
    %v1645 = vpop.xlane.xlu0 %1644
    %v1646 = vrcp.pop 32.0
    %v1647 = vmul.f32 32.0, %v1646
    %v1648 = vsub.f32 1.0, %v1647
    %v1649 = vmul.f32 %v1646, %v1648
    %v1650 = vadd.f32 %v1646, %v1649
    %vm1651 = vweird.f32 %v1646
    %v1652 = vsel %vm1651, %v1646, %v1650
    %v1653 = vmul.f32 %v1642, %v1652
    %v1654 = vmul.f32 %v1645, %v1652
    %v1655 = vsub.f32 %v1638, %v1653
    %v1656 = vsub.f32 %v1639, %v1654
    %v1657 = vmul.f32 %v1655, %v1655
    %v1658 = vmul.f32 %v1656, %v1656
    %v1659 = vsel %vm84, %v1657, 0.0
    %1660 = vadd.xlane.f32.xlu0 %v1659
    %v1661 = vpop.xlane.xlu0 %1660
    %v1662 = vsel %vm84, %v1658, 0.0
    %1663 = vadd.xlane.f32.xlu0 %v1662
    %v1664 = vpop.xlane.xlu0 %1663
    %v1665 = vmul.f32 %v1661, %v1652
    %v1666 = vmul.f32 %v1664, %v1652
    %v1667 = vadd.f32 %v1665, 1e-05
    %v1668 = vadd.f32 %v1666, 1e-05
    %v1669 = vrsqrt.pop %v1667
    %v1670 = vmul.f32 %v1669, %v1667
    %v1671 = vmul.f32 %v1670, %v1669
    %v1672 = vmul.f32 0.5, %v1671
    %v1673 = vsub.f32 1.5, %v1672
    %v1674 = vmul.f32 %v1669, %v1673
    %vm1675 = vweird.f32 %v1667
    %vm1676 = vweird.f32 %v1669
    %vm1677 = vmor %vm1675, %vm1676
    %v1678 = vsel %vm1677, %v1669, %v1674
    %v1679 = vrsqrt.pop %v1668
    %v1680 = vmul.f32 %v1679, %v1668
    %v1681 = vmul.f32 %v1680, %v1679
    %v1682 = vmul.f32 0.5, %v1681
    %v1683 = vsub.f32 1.5, %v1682
    %v1684 = vmul.f32 %v1679, %v1683
    %vm1685 = vweird.f32 %v1668
    %vm1686 = vweird.f32 %v1679
    %vm1687 = vmor %vm1685, %vm1686
    %v1688 = vsel %vm1687, %v1679, %v1684
    %v1689 = vmul.f32 %v1655, %v1678
    %v1690 = vmul.f32 %v1656, %v1688
    %v1691 = vperm.slane %v82, 3
    %v1692 = vmul.f32 %v1689, %v1691
    %v1693 = vmul.f32 %v1690, %v1691
    %v1694 = vperm.slane %v82, 4
    %v1695 = vadd.f32 %v1692, %v1694
    %v1696 = vadd.f32 %v1693, %v1694
    %v1697 = vperm.slane %v82, 1
    %v1699 = vsel %vm84, %v1695, 0
    %v1702 = vsel %vm84, %v1696, 0
    %1704 = vmatpush.msra.mxu0 0.0
    %1705 = vmatpush.msra.mxu0 0.0
    %1706 = vmatpush.msra.mxu0 0.0
    %1707 = vmatpush.msra.mxu0 0.0
    %1708 = vmatpush.msra.mxu0 0.0
    %1709 = vmatpush.msra.mxu0 0.0
    %1710 = vmatpush.msra.mxu0 0.0
    %1711 = vmatpush.msra.mxu0 0.0
    %1712 = vmatpush.msra.mxu0 0.0
    %1713 = vmatpush.msra.mxu0 0.0
    %1714 = vmatpush.msra.mxu0 0.0
    %1715 = vmatpush.msra.mxu0 0.0
    %1716 = vmatpush.msra.mxu0 %v81
    %1717 = vmatpush.msra.mxu0 %v80
    %1718 = vmatpush.msra.mxu0 %v79
    %1719 = vmatpush.msra.mxu0 %v78
    %1720 = vmatmul.f32.gmra.mxu0 %v1699
    %v1721 = vpop.f32.mrf.mxu0
    %v1722 = vadd.f32 %v1697, %v1721
    %1723 = vmatmul.f32.gmra.mxu0 %v1702
    %v1724 = vpop.f32.mrf.mxu0
    %v1725 = vadd.f32 %v1697, %v1724
    %1726 = vdwg.mxu0
    %v1727 = vmul.f32 %v1722, 0.5
    %v1728 = vmul.f32 %v1725, 0.5
    %v1729 = vrcp.pop 1.4142135
    %v1730 = vmul.f32 1.4142135, %v1729
    %v1731 = vsub.f32 1.0, %v1730
    %v1732 = vmul.f32 %v1729, %v1731
    %v1733 = vadd.f32 %v1729, %v1732
    %vm1734 = vweird.f32 %v1729
    %v1735 = vsel %vm1734, %v1729, %v1733
    %v1736 = vmul.f32 %v1722, %v1735
    %v1737 = vmul.f32 %v1725, %v1735
    %v1738 = vmul.f32 %v1736, %v1736
    %v1739 = vmin.f32 16.0, %v1738
    %v1740 = vmul.f32 %v1739, 2.1237322e-06
    %v1741 = vadd.f32 %v1740, 0.00028619796
    %v1742 = vmul.f32 %v1739, %v1741
    %v1743 = vadd.f32 %v1742, 0.0036580483
    %v1744 = vmul.f32 %v1739, %v1743
    %v1745 = vadd.f32 %v1744, 0.05243302
    %v1746 = vmul.f32 %v1739, %v1745
    %v1747 = vadd.f32 %v1746, 0.18741608
    %v1748 = vmul.f32 %v1739, %v1747
    %v1749 = vadd.f32 %v1748, 1.1283791
    %v1750 = vmul.f32 %v1736, %v1749
    %v1751 = vmul.f32 %v1739, 3.8918573e-05
    %v1752 = vadd.f32 %v1751, 0.001143296
    %v1753 = vmul.f32 %v1739, %v1752
    %v1754 = vadd.f32 %v1753, 0.014752088
    %v1755 = vmul.f32 %v1739, %v1754
    %v1756 = vadd.f32 %v1755, 0.112945676
    %v1757 = vmul.f32 %v1739, %v1756
    %v1758 = vadd.f32 %v1757, 0.4994258
    %v1759 = vmul.f32 %v1739, %v1758
    %v1760 = vadd.f32 %v1759, 1.0
    %v1761 = vrcp.pop %v1760
    %v1762 = vmul.f32 %v1760, %v1761
    %v1763 = vsub.f32 1.0, %v1762
    %v1764 = vmul.f32 %v1761, %v1763
    %v1765 = vadd.f32 %v1761, %v1764
    %vm1766 = vweird.f32 %v1760
    %vm1767 = vweird.f32 %v1761
    %vm1768 = vmor %vm1766, %vm1767
    %v1769 = vsel %vm1768, %v1761, %v1765
    %v1770 = vand.u32 2147483647, %v1760
    %vm1771 = vcmp.eq.f32.partialorder %v1770, 8.507059e+37
    %v1772 = vand.u32 %v1760, 2147483648
    %v1773 = vor.u32 1.1754944e-38, %v1772
    %v1774 = vsel %vm1771, %v1773, %v1769
    %v1775 = vmul.f32 %v1750, %v1774
    %v1776 = vmin.f32 %v1775, 1.0
    %v1777 = vmax.f32 %v1776, -1.0
    %v1778 = vmul.f32 %v1737, %v1737
    %v1779 = vmin.f32 16.0, %v1778
    %v1780 = vmul.f32 %v1779, 2.1237322e-06
    %v1781 = vadd.f32 %v1780, 0.00028619796
    %v1782 = vmul.f32 %v1779, %v1781
    %v1783 = vadd.f32 %v1782, 0.0036580483
    %v1784 = vmul.f32 %v1779, %v1783
    %v1785 = vadd.f32 %v1784, 0.05243302
    %v1786 = vmul.f32 %v1779, %v1785
    %v1787 = vadd.f32 %v1786, 0.18741608
    %v1788 = vmul.f32 %v1779, %v1787
    %v1789 = vadd.f32 %v1788, 1.1283791
    %v1790 = vmul.f32 %v1737, %v1789
    %v1791 = vmul.f32 %v1779, 3.8918573e-05
    %v1792 = vadd.f32 %v1791, 0.001143296
    %v1793 = vmul.f32 %v1779, %v1792
    %v1794 = vadd.f32 %v1793, 0.014752088
    %v1795 = vmul.f32 %v1779, %v1794
    %v1796 = vadd.f32 %v1795, 0.112945676
    %v1797 = vmul.f32 %v1779, %v1796
    %v1798 = vadd.f32 %v1797, 0.4994258
    %v1799 = vmul.f32 %v1779, %v1798
    %v1800 = vadd.f32 %v1799, 1.0
    %v1801 = vrcp.pop %v1800
    %v1802 = vmul.f32 %v1800, %v1801
    %v1803 = vsub.f32 1.0, %v1802
    %v1804 = vmul.f32 %v1801, %v1803
    %v1805 = vadd.f32 %v1801, %v1804
    %vm1806 = vweird.f32 %v1800
    %vm1807 = vweird.f32 %v1801
    %vm1808 = vmor %vm1806, %vm1807
    %v1809 = vsel %vm1808, %v1801, %v1805
    %v1810 = vand.u32 2147483647, %v1800
    %vm1811 = vcmp.eq.f32.partialorder %v1810, 8.507059e+37
    %v1812 = vand.u32 %v1800, 2147483648
    %v1813 = vor.u32 1.1754944e-38, %v1812
    %v1814 = vsel %vm1811, %v1813, %v1809
    %v1815 = vmul.f32 %v1790, %v1814
    %v1816 = vmin.f32 %v1815, 1.0
    %v1817 = vmax.f32 %v1816, -1.0
    %v1818 = vadd.f32 %v1777, 1.0
    %v1819 = vadd.f32 %v1817, 1.0
    %v1820 = vmul.f32 %v1727, %v1818
    %v1821 = vmul.f32 %v1728, %v1819
    %v1822 = vperm.slane %v82, 5
    %vm1823 = vcmask 523264
    %v1825 = vsel %vm1823, %v1820, 0
    %v1828 = vsel %vm1823, %v1821, 0
    %1830 = vmatpush.msra.mxu0 0.0
    %1831 = vmatpush.msra.mxu0 0.0
    %1832 = vmatpush.msra.mxu0 0.0
    %1833 = vmatpush.msra.mxu0 0.0
    %1834 = vmatpush.msra.mxu0 0.0
    %1835 = vmatpush.msra.mxu0 0.0
    %1836 = vmatpush.msra.mxu0 0.0
    %1837 = vmatpush.msra.mxu0 0.0
    %1838 = vmatpush.msra.mxu0 %v77
    %1839 = vmatpush.msra.mxu0 %v76
    %1840 = vmatpush.msra.mxu0 %v75
    %1841 = vmatpush.msra.mxu0 %v74
    %1842 = vmatpush.msra.mxu0 %v73
    %1843 = vmatpush.msra.mxu0 %v72
    %1844 = vmatpush.msra.mxu0 %v71
    %1845 = vmatpush.msra.mxu0 %v70
    %1846 = vmatmul.f32.gmra.mxu0 %v1825
    %v1847 = vpop.f32.mrf.mxu0
    %v1848 = vadd.f32 %v1822, %v1847
    %1849 = vmatmul.f32.gmra.mxu0 %v1828
    %v1850 = vpop.f32.mrf.mxu0
    %v1851 = vadd.f32 %v1822, %v1850
    %1852 = vdwg.mxu0
    %v1853 = vadd.f32 %v1848, %v1695
    %v1854 = vadd.f32 %v1851, %v1696
    %v1855 = vsel %vm84, %v1853, 0.0
    %1856 = vadd.xlane.f32.xlu0 %v1855
    %v1857 = vpop.xlane.xlu0 %1856
    %v1858 = vsel %vm84, %v1854, 0.0
    %1859 = vadd.xlane.f32.xlu0 %v1858
    %v1860 = vpop.xlane.xlu0 %1859
    %v1861 = vmul.f32 %v1857, %v1652
    %v1862 = vmul.f32 %v1860, %v1652
    %v1863 = vsub.f32 %v1853, %v1861
    %v1864 = vsub.f32 %v1854, %v1862
    %v1865 = vmul.f32 %v1863, %v1863
    %v1866 = vmul.f32 %v1864, %v1864
    %v1867 = vsel %vm84, %v1865, 0.0
    %1868 = vadd.xlane.f32.xlu0 %v1867
    %v1869 = vpop.xlane.xlu0 %1868
    %v1870 = vsel %vm84, %v1866, 0.0
    %1871 = vadd.xlane.f32.xlu0 %v1870
    %v1872 = vpop.xlane.xlu0 %1871
    %v1873 = vmul.f32 %v1869, %v1652
    %v1874 = vmul.f32 %v1872, %v1652
    %v1875 = vadd.f32 %v1873, 1e-05
    %v1876 = vadd.f32 %v1874, 1e-05
    %v1877 = vrsqrt.pop %v1875
    %v1878 = vmul.f32 %v1877, %v1875
    %v1879 = vmul.f32 %v1878, %v1877
    %v1880 = vmul.f32 0.5, %v1879
    %v1881 = vsub.f32 1.5, %v1880
    %v1882 = vmul.f32 %v1877, %v1881
    %vm1883 = vweird.f32 %v1875
    %vm1884 = vweird.f32 %v1877
    %vm1885 = vmor %vm1883, %vm1884
    %v1886 = vsel %vm1885, %v1877, %v1882
    %v1887 = vrsqrt.pop %v1876
    %v1888 = vmul.f32 %v1887, %v1876
    %v1889 = vmul.f32 %v1888, %v1887
    %v1890 = vmul.f32 0.5, %v1889
    %v1891 = vsub.f32 1.5, %v1890
    %v1892 = vmul.f32 %v1887, %v1891
    %vm1893 = vweird.f32 %v1876
    %vm1894 = vweird.f32 %v1887
    %vm1895 = vmor %vm1893, %vm1894
    %v1896 = vsel %vm1895, %v1887, %v1892
    %v1897 = vmul.f32 %v1863, %v1886
    %v1898 = vmul.f32 %v1864, %v1896
    %v1899 = vperm.slane %v82, 6
    %v1900 = vmul.f32 %v1897, %v1899
    %v1901 = vmul.f32 %v1898, %v1899
    %v1902 = vperm.slane %v82, 7
    %v1903 = vadd.f32 %v1900, %v1902
    %v1904 = vadd.f32 %v1901, %v1902
    %1905 = vst.msk [vmem:[#allocation8] sm:$0xff] %vm84, %v1903
    %1906 = vst.msk [vmem:[#allocation8 + $0x8] sm:$0xff] %vm84, %v1904
    // Predicated region
    $region26: #{bert_layer.1} parent=1 // pred_check
      _
    $region27: #{bert_layer.1} parent=1 // pred_check_branch
      %1908 = sbr.rel (0) target = $region29
    $region28: #{bert_layer.1} parent=1 // pred_region
      %1910 = vsyncadd [#allocation4], 0
      %s1911 = sshll.u32 [#allocation8], 4
      %s1912 = int_to_ptr.vmem [resolvable:$true] %s1911
      %s1913 = sshll.u32 %s3, 4
      %s1914 = int_to_ptr.hbm [resolvable:$true] %s1913
      %1919 = dma.vmem_to_hbm [thread:$0]  %s1912, 256, %s1914, [#allocation4], 128, 128, 8
    $region29: #{bert_layer.1} parent=1 // pred_fallthru
      _
    // Predicated region
    $region30: #{bert_layer.1} parent=1 // pred_check
      _
    $region31: #{bert_layer.1} parent=1 // pred_check_branch
      %1921 = sbr.rel (0) target = $region33
    $region32: #{bert_layer.1} parent=1 // pred_region
      %1923 = dma.done [#allocation4], 256
    $region33: #{bert_layer.1} parent=1 // pred_fallthru
      _
    %1924 = vsyncpa [#allocation3], 1
    %1925 = vsyncpa [#allocation6], 1
    %1926 = vsyncpa [#allocation4], 1

</llo_original>
